<compile_context>
chip_gen: v7x
topology: tpu7x:2x2x1
jax: 0.10.0
libtpu: 0.0.40
codegen_flags: <defaults>
</compile_context>

<pallas_src>
import numpy as np
import jax
import jax.numpy as jnp
from jax.experimental import pallas as pl
from jax.experimental.pallas import tpu as pltpu

LN_EPS = 1e-5  # torch.nn.LayerNorm default


def _embedding_kernel(x_sref, seg_ref, tok_hbm, pos_ref, segt_ref,
                      gamma_ref, beta_ref, out_ref, tok_buf, sem):
    # x_sref:   (B, S) int32 token ids in SMEM (scalar prefetch)
    # seg_ref:  (1, T, 1) int32 segment ids for this tile (VMEM block)
    # tok_hbm:  (V, D) token table, left in HBM (memory_space=pl.ANY)
    # pos_ref:  (T, D) positional rows for this seq tile (BlockSpec slice)
    # segt_ref: (G, D) segment table; gamma_ref/beta_ref: (1, D)
    # out_ref:  (1, T, D); tok_buf: (T, D) VMEM gather scratch; sem: DMA sem (1,)
    j = pl.program_id(0)          # seq-tile index (outer grid axis)
    b = pl.program_id(1)          # batch index   (inner grid axis)
    T, D = tok_buf.shape
    G = segt_ref.shape[0]
    base = j * T

    # --- token embedding: HBM row gather (zero FLOPs). Issue all row DMAs. ---
    def row_copy(i):
        tok_id = x_sref[b, base + i]
        return pltpu.make_async_copy(tok_hbm.at[pl.ds(tok_id, 1), :],
                                     tok_buf.at[pl.ds(i, 1), :],
                                     sem.at[0])

    for i in range(T):            # T is static -> fully unrolled issue loop
        row_copy(i).start()

    # --- overlap: positional + segment embedding while the gather is in flight ---
    pos_emb = pos_ref[...].astype(jnp.float32)               # (T, D)
    seg_ids = seg_ref[0]                                      # (T, 1) int32
    seg_rows = segt_ref[...].astype(jnp.float32)              # (G, D)
    seg_emb = jnp.broadcast_to(seg_rows[0:1, :], (T, D))
    for g in range(1, G):                                     # G == 2 -> one where
        seg_emb = jnp.where(seg_ids == g, seg_rows[g:g + 1, :], seg_emb)
    partial = pos_emb + seg_emb                               # (T, D) f32

    # --- drain the gather, add the token rows ---
    for i in range(T):
        row_copy(i).wait()
    emb = partial + tok_buf[...].astype(jnp.float32)          # (T, D) f32

    # --- LayerNorm (centered two-pass stats, f32) ---
    mean = jnp.mean(emb, axis=-1, keepdims=True)
    diff = emb - mean
    var = jnp.mean(diff * diff, axis=-1, keepdims=True)
    normed = diff * jax.lax.rsqrt(var + LN_EPS)
    out = (normed * gamma_ref[...].astype(jnp.float32)
           + beta_ref[...].astype(jnp.float32))
    out_ref[0] = out.astype(out_ref.dtype)


def embedding_forward(x, seg, tok_table, pos_table, seg_table, gamma, beta,
                      *, tile_s=None, out_dtype=None):
    B, S = x.shape
    V, D = tok_table.shape
    G = seg_table.shape[0]
    if out_dtype is None:
        out_dtype = tok_table.dtype

    if tile_s is None:
        tile_s = S
        for cand in (512, 256, 128):
            if S % cand == 0:
                tile_s = cand
                break
    assert S % tile_s == 0, "tile_s must divide S (kernel has no partial-tile mask)"
    num_tiles = S // tile_s

    # seq-tile axis OUTERMOST: the pos-table slice index (j, 0) is constant across
    # the inner batch axis, so Pallas does not re-DMA it per batch row.
    grid = (num_tiles, B)

    x_ids = x.astype(jnp.int32)                         # (B, S) -> SMEM (prefetch)
    seg3 = seg.reshape(B, S, 1).astype(jnp.int32)       # ids on the sublane axis
    gamma2 = gamma.reshape(1, D)
    beta2 = beta.reshape(1, D)

    # VMEM estimate: pipelined blocks are double-buffered; gather scratch is single.
    isz = lambda a: jnp.dtype(a.dtype).itemsize
    est_vmem = (2 * tile_s * 4                                   # seg-id block
                + 2 * tile_s * D * isz(pos_table)                # pos slice
                + 2 * (G * D * isz(seg_table) + 2 * D * isz(gamma2))
                + 2 * tile_s * D * jnp.dtype(out_dtype).itemsize  # output tile
                + tile_s * D * isz(tok_table))                   # gather scratch
    try:   # per-generation cap (v7x has only 64 MiB physical VMEM)
        cap = int(pltpu.get_tpu_info().vmem_capacity_bytes) * 3 // 4
    except Exception:
        cap = 48 * 1024 * 1024
    vmem_limit = int(min(cap, max(4 * 1024 * 1024, 4 * est_vmem)))

    return pl.pallas_call(
        _embedding_kernel,
        out_shape=jax.ShapeDtypeStruct((B, S, D), out_dtype),
        grid_spec=pltpu.PrefetchScalarGridSpec(
            num_scalar_prefetch=1,                      # token ids -> SMEM
            grid=grid,
            in_specs=[
                pl.BlockSpec((1, tile_s, 1), lambda j, b, ids: (b, j, 0)),  # seg ids
                pl.BlockSpec(memory_space=pl.ANY),                          # tok table (HBM)
                pl.BlockSpec((tile_s, D), lambda j, b, ids: (j, 0)),        # pos rows
                pl.BlockSpec((G, D), lambda j, b, ids: (0, 0)),             # seg table
                pl.BlockSpec((1, D), lambda j, b, ids: (0, 0)),             # gamma
                pl.BlockSpec((1, D), lambda j, b, ids: (0, 0)),             # beta
            ],
            out_specs=pl.BlockSpec((1, tile_s, D), lambda j, b, ids: (b, j, 0)),
            scratch_shapes=[
                pltpu.VMEM((tile_s, D), tok_table.dtype),   # gathered token rows
                pltpu.SemaphoreType.DMA((1,)),              # gather completion sem
            ],
        ),
        compiler_params=pltpu.CompilerParams(
            dimension_semantics=("parallel", "parallel"),
            vmem_limit_bytes=vmem_limit,
        ),
    )(x_ids, seg3, tok_table, pos_table, seg_table, gamma2, beta2)


def _reference(x, seg, tok_table, pos_table, seg_table, gamma, beta):
    S = x.shape[1]
    emb = (jnp.take(tok_table, x, axis=0)
           + jnp.take(pos_table, jnp.arange(S), axis=0)[None, :, :]
           + jnp.take(seg_table, seg, axis=0))
    mean = jnp.mean(emb, axis=-1, keepdims=True)
    var = jnp.mean((emb - mean) ** 2, axis=-1, keepdims=True)
    return (emb - mean) / jnp.sqrt(var + LN_EPS) * gamma[0] + beta[0]


if __name__ == "__main__":
    # Module hyper-params (small, but consistent with the PyTorch __init__)
    vocab_size = 32
    max_embedding_size = 32   # hidden dim D
    segment_num = 2
    maxlen = 64
    B, S = 2, 8

    key = jax.random.PRNGKey(0)
    k_tok, k_pos, k_seg, k_x, k_s = jax.random.split(key, 5)

    # nn.Embedding default init ~ N(0, 1); LayerNorm default gamma=1, beta=0
    tok_table = jax.random.normal(k_tok, (vocab_size, max_embedding_size), jnp.float32)
    pos_table = jax.random.normal(k_pos, (maxlen, max_embedding_size), jnp.float32)
    seg_table = jax.random.normal(k_seg, (segment_num, max_embedding_size), jnp.float32)
    gamma = jnp.ones((1, max_embedding_size), jnp.float32)
    beta = jnp.zeros((1, max_embedding_size), jnp.float32)

    x = jax.random.randint(k_x, (B, S), 0, vocab_size, dtype=jnp.int32)
    seg = jax.random.randint(k_s, (B, S), 0, segment_num, dtype=jnp.int32)

    out = embedding_forward(x, seg, tok_table, pos_table, seg_table, gamma, beta)
    out = jax.block_until_ready(out)

    ref = _reference(x, seg, tok_table, pos_table, seg_table, gamma, beta)
    np.testing.assert_allclose(np.asarray(out), np.asarray(ref), rtol=1e-5, atol=1e-5)

    print("KERNEL_OK")
</pallas_src>

<mosaic_0001>
module attributes {stable_mosaic.version = 11 : i64} {
  func.func @_embedding_kernel(%arg0: i32, %arg1: i32, %arg2: memref<2x8xi32, #tpu.memory_space<smem>>, %arg3: memref<1x8x1xi32, #tpu.memory_space<vmem>>, %arg4: memref<32x32xf32, #tpu.memory_space<any>>, %arg5: memref<8x32xf32, #tpu.memory_space<vmem>>, %arg6: memref<2x32xf32, #tpu.memory_space<vmem>>, %arg7: memref<1x32xf32, #tpu.memory_space<vmem>>, %arg8: memref<1x32xf32, #tpu.memory_space<vmem>>, %arg9: memref<1x8x32xf32, #tpu.memory_space<vmem>>, %arg10: memref<8x32xf32, #tpu.memory_space<vmem>>, %arg11: memref<1x!tpu.dma_semaphore, #tpu.memory_space<semaphore_mem>>) attributes {dimension_semantics = [#tpu.dimension_semantics<parallel>, #tpu.dimension_semantics<parallel>], iteration_bounds = array<i64: 1, 2>, scalar_prefetch = 1 : i64, scratch_operands = 2 : i64, tpu.core_type = #tpu.core_type<tc>, window_params = [{transform_indices = @transform_0, window_bounds = array<i64: 1, 8, 1>}, {}, {transform_indices = @transform_2, window_bounds = array<i64: 8, 32>}, {pipeline_mode = #tpu.pipeline_mode<synchronous>, transform_indices = @transform_3, window_bounds = array<i64: 2, 32>}, {pipeline_mode = #tpu.pipeline_mode<synchronous>, transform_indices = @transform_4, window_bounds = array<i64: 1, 32>}, {pipeline_mode = #tpu.pipeline_mode<synchronous>, transform_indices = @transform_5, window_bounds = array<i64: 1, 32>}, {transform_indices = @transform_6, window_bounds = array<i64: 1, 8, 32>}]} {
    %c8_i32 = arith.constant 8 : i32
    %0 = arith.muli %arg0, %c8_i32 : i32
    %c0_i32 = arith.constant 0 : i32
    %1 = arith.addi %0, %c0_i32 : i32
    %2 = arith.index_cast %arg1 : i32 to index
    %3 = arith.index_cast %1 : i32 to index
    %4 = memref.load %arg2[%2, %3] : memref<2x8xi32, #tpu.memory_space<smem>>
    %c0_i32_0 = arith.constant 0 : i32
    %c0_i32_1 = arith.constant 0 : i32
    %5 = tpu.memref_slice %arg4[%4, %c0_i32_1] : memref<32x32xf32, #tpu.memory_space<any>> -> memref<1x32xf32, #tpu.memory_space<any>>
    %c0_i32_2 = arith.constant 0 : i32
    %c0_i32_3 = arith.constant 0 : i32
    %6 = tpu.memref_slice %arg10[%c0_i32_2, %c0_i32_3] : memref<8x32xf32, #tpu.memory_space<vmem>> -> memref<1x32xf32, #tpu.memory_space<vmem>>
    %7 = tpu.memref_slice %arg11[%c0_i32_0] : memref<1x!tpu.dma_semaphore, #tpu.memory_space<semaphore_mem>> -> memref<1x!tpu.dma_semaphore, #tpu.memory_space<semaphore_mem>>
    %8 = tpu.memref_squeeze %7 : memref<1x!tpu.dma_semaphore, #tpu.memory_space<semaphore_mem>> -> memref<!tpu.dma_semaphore, #tpu.memory_space<semaphore_mem>>
    tpu.enqueue_dma source(%5 : memref<1x32xf32, #tpu.memory_space<any>>) target(%6 : memref<1x32xf32, #tpu.memory_space<vmem>>) target_semaphore(%8 : memref<!tpu.dma_semaphore, #tpu.memory_space<semaphore_mem>>)
    %c1_i32 = arith.constant 1 : i32
    %9 = arith.addi %0, %c1_i32 : i32
    %10 = arith.index_cast %arg1 : i32 to index
    %11 = arith.index_cast %9 : i32 to index
    %12 = memref.load %arg2[%10, %11] : memref<2x8xi32, #tpu.memory_space<smem>>
    %c0_i32_4 = arith.constant 0 : i32
    %c0_i32_5 = arith.constant 0 : i32
    %13 = tpu.memref_slice %arg4[%12, %c0_i32_5] : memref<32x32xf32, #tpu.memory_space<any>> -> memref<1x32xf32, #tpu.memory_space<any>>
    %c1_i32_6 = arith.constant 1 : i32
    %c0_i32_7 = arith.constant 0 : i32
    %14 = tpu.memref_slice %arg10[%c1_i32_6, %c0_i32_7] : memref<8x32xf32, #tpu.memory_space<vmem>> -> memref<1x32xf32, #tpu.memory_space<vmem>>
    %15 = tpu.memref_slice %arg11[%c0_i32_4] : memref<1x!tpu.dma_semaphore, #tpu.memory_space<semaphore_mem>> -> memref<1x!tpu.dma_semaphore, #tpu.memory_space<semaphore_mem>>
    %16 = tpu.memref_squeeze %15 : memref<1x!tpu.dma_semaphore, #tpu.memory_space<semaphore_mem>> -> memref<!tpu.dma_semaphore, #tpu.memory_space<semaphore_mem>>
    tpu.enqueue_dma source(%13 : memref<1x32xf32, #tpu.memory_space<any>>) target(%14 : memref<1x32xf32, #tpu.memory_space<vmem>>) target_semaphore(%16 : memref<!tpu.dma_semaphore, #tpu.memory_space<semaphore_mem>>)
    %c2_i32 = arith.constant 2 : i32
    %17 = arith.addi %0, %c2_i32 : i32
    %18 = arith.index_cast %arg1 : i32 to index
    %19 = arith.index_cast %17 : i32 to index
    %20 = memref.load %arg2[%18, %19] : memref<2x8xi32, #tpu.memory_space<smem>>
    %c0_i32_8 = arith.constant 0 : i32
    %c0_i32_9 = arith.constant 0 : i32
    %21 = tpu.memref_slice %arg4[%20, %c0_i32_9] : memref<32x32xf32, #tpu.memory_space<any>> -> memref<1x32xf32, #tpu.memory_space<any>>
    %c2_i32_10 = arith.constant 2 : i32
    %c0_i32_11 = arith.constant 0 : i32
    %22 = tpu.memref_slice %arg10[%c2_i32_10, %c0_i32_11] : memref<8x32xf32, #tpu.memory_space<vmem>> -> memref<1x32xf32, #tpu.memory_space<vmem>>
    %23 = tpu.memref_slice %arg11[%c0_i32_8] : memref<1x!tpu.dma_semaphore, #tpu.memory_space<semaphore_mem>> -> memref<1x!tpu.dma_semaphore, #tpu.memory_space<semaphore_mem>>
    %24 = tpu.memref_squeeze %23 : memref<1x!tpu.dma_semaphore, #tpu.memory_space<semaphore_mem>> -> memref<!tpu.dma_semaphore, #tpu.memory_space<semaphore_mem>>
    tpu.enqueue_dma source(%21 : memref<1x32xf32, #tpu.memory_space<any>>) target(%22 : memref<1x32xf32, #tpu.memory_space<vmem>>) target_semaphore(%24 : memref<!tpu.dma_semaphore, #tpu.memory_space<semaphore_mem>>)
    %c3_i32 = arith.constant 3 : i32
    %25 = arith.addi %0, %c3_i32 : i32
    %26 = arith.index_cast %arg1 : i32 to index
    %27 = arith.index_cast %25 : i32 to index
    %28 = memref.load %arg2[%26, %27] : memref<2x8xi32, #tpu.memory_space<smem>>
    %c0_i32_12 = arith.constant 0 : i32
    %c0_i32_13 = arith.constant 0 : i32
    %29 = tpu.memref_slice %arg4[%28, %c0_i32_13] : memref<32x32xf32, #tpu.memory_space<any>> -> memref<1x32xf32, #tpu.memory_space<any>>
    %c3_i32_14 = arith.constant 3 : i32
    %c0_i32_15 = arith.constant 0 : i32
    %30 = tpu.memref_slice %arg10[%c3_i32_14, %c0_i32_15] : memref<8x32xf32, #tpu.memory_space<vmem>> -> memref<1x32xf32, #tpu.memory_space<vmem>>
    %31 = tpu.memref_slice %arg11[%c0_i32_12] : memref<1x!tpu.dma_semaphore, #tpu.memory_space<semaphore_mem>> -> memref<1x!tpu.dma_semaphore, #tpu.memory_space<semaphore_mem>>
    %32 = tpu.memref_squeeze %31 : memref<1x!tpu.dma_semaphore, #tpu.memory_space<semaphore_mem>> -> memref<!tpu.dma_semaphore, #tpu.memory_space<semaphore_mem>>
    tpu.enqueue_dma source(%29 : memref<1x32xf32, #tpu.memory_space<any>>) target(%30 : memref<1x32xf32, #tpu.memory_space<vmem>>) target_semaphore(%32 : memref<!tpu.dma_semaphore, #tpu.memory_space<semaphore_mem>>)
    %c4_i32 = arith.constant 4 : i32
    %33 = arith.addi %0, %c4_i32 : i32
    %34 = arith.index_cast %arg1 : i32 to index
    %35 = arith.index_cast %33 : i32 to index
    %36 = memref.load %arg2[%34, %35] : memref<2x8xi32, #tpu.memory_space<smem>>
    %c0_i32_16 = arith.constant 0 : i32
    %c0_i32_17 = arith.constant 0 : i32
    %37 = tpu.memref_slice %arg4[%36, %c0_i32_17] : memref<32x32xf32, #tpu.memory_space<any>> -> memref<1x32xf32, #tpu.memory_space<any>>
    %c4_i32_18 = arith.constant 4 : i32
    %c0_i32_19 = arith.constant 0 : i32
    %38 = tpu.memref_slice %arg10[%c4_i32_18, %c0_i32_19] : memref<8x32xf32, #tpu.memory_space<vmem>> -> memref<1x32xf32, #tpu.memory_space<vmem>>
    %39 = tpu.memref_slice %arg11[%c0_i32_16] : memref<1x!tpu.dma_semaphore, #tpu.memory_space<semaphore_mem>> -> memref<1x!tpu.dma_semaphore, #tpu.memory_space<semaphore_mem>>
    %40 = tpu.memref_squeeze %39 : memref<1x!tpu.dma_semaphore, #tpu.memory_space<semaphore_mem>> -> memref<!tpu.dma_semaphore, #tpu.memory_space<semaphore_mem>>
    tpu.enqueue_dma source(%37 : memref<1x32xf32, #tpu.memory_space<any>>) target(%38 : memref<1x32xf32, #tpu.memory_space<vmem>>) target_semaphore(%40 : memref<!tpu.dma_semaphore, #tpu.memory_space<semaphore_mem>>)
    %c5_i32 = arith.constant 5 : i32
    %41 = arith.addi %0, %c5_i32 : i32
    %42 = arith.index_cast %arg1 : i32 to index
    %43 = arith.index_cast %41 : i32 to index
    %44 = memref.load %arg2[%42, %43] : memref<2x8xi32, #tpu.memory_space<smem>>
    %c0_i32_20 = arith.constant 0 : i32
    %c0_i32_21 = arith.constant 0 : i32
    %45 = tpu.memref_slice %arg4[%44, %c0_i32_21] : memref<32x32xf32, #tpu.memory_space<any>> -> memref<1x32xf32, #tpu.memory_space<any>>
    %c5_i32_22 = arith.constant 5 : i32
    %c0_i32_23 = arith.constant 0 : i32
    %46 = tpu.memref_slice %arg10[%c5_i32_22, %c0_i32_23] : memref<8x32xf32, #tpu.memory_space<vmem>> -> memref<1x32xf32, #tpu.memory_space<vmem>>
    %47 = tpu.memref_slice %arg11[%c0_i32_20] : memref<1x!tpu.dma_semaphore, #tpu.memory_space<semaphore_mem>> -> memref<1x!tpu.dma_semaphore, #tpu.memory_space<semaphore_mem>>
    %48 = tpu.memref_squeeze %47 : memref<1x!tpu.dma_semaphore, #tpu.memory_space<semaphore_mem>> -> memref<!tpu.dma_semaphore, #tpu.memory_space<semaphore_mem>>
    tpu.enqueue_dma source(%45 : memref<1x32xf32, #tpu.memory_space<any>>) target(%46 : memref<1x32xf32, #tpu.memory_space<vmem>>) target_semaphore(%48 : memref<!tpu.dma_semaphore, #tpu.memory_space<semaphore_mem>>)
    %c6_i32 = arith.constant 6 : i32
    %49 = arith.addi %0, %c6_i32 : i32
    %50 = arith.index_cast %arg1 : i32 to index
    %51 = arith.index_cast %49 : i32 to index
    %52 = memref.load %arg2[%50, %51] : memref<2x8xi32, #tpu.memory_space<smem>>
    %c0_i32_24 = arith.constant 0 : i32
    %c0_i32_25 = arith.constant 0 : i32
    %53 = tpu.memref_slice %arg4[%52, %c0_i32_25] : memref<32x32xf32, #tpu.memory_space<any>> -> memref<1x32xf32, #tpu.memory_space<any>>
    %c6_i32_26 = arith.constant 6 : i32
    %c0_i32_27 = arith.constant 0 : i32
    %54 = tpu.memref_slice %arg10[%c6_i32_26, %c0_i32_27] : memref<8x32xf32, #tpu.memory_space<vmem>> -> memref<1x32xf32, #tpu.memory_space<vmem>>
    %55 = tpu.memref_slice %arg11[%c0_i32_24] : memref<1x!tpu.dma_semaphore, #tpu.memory_space<semaphore_mem>> -> memref<1x!tpu.dma_semaphore, #tpu.memory_space<semaphore_mem>>
    %56 = tpu.memref_squeeze %55 : memref<1x!tpu.dma_semaphore, #tpu.memory_space<semaphore_mem>> -> memref<!tpu.dma_semaphore, #tpu.memory_space<semaphore_mem>>
    tpu.enqueue_dma source(%53 : memref<1x32xf32, #tpu.memory_space<any>>) target(%54 : memref<1x32xf32, #tpu.memory_space<vmem>>) target_semaphore(%56 : memref<!tpu.dma_semaphore, #tpu.memory_space<semaphore_mem>>)
    %c7_i32 = arith.constant 7 : i32
    %57 = arith.addi %0, %c7_i32 : i32
    %58 = arith.index_cast %arg1 : i32 to index
    %59 = arith.index_cast %57 : i32 to index
    %60 = memref.load %arg2[%58, %59] : memref<2x8xi32, #tpu.memory_space<smem>>
    %c0_i32_28 = arith.constant 0 : i32
    %c0_i32_29 = arith.constant 0 : i32
    %61 = tpu.memref_slice %arg4[%60, %c0_i32_29] : memref<32x32xf32, #tpu.memory_space<any>> -> memref<1x32xf32, #tpu.memory_space<any>>
    %c7_i32_30 = arith.constant 7 : i32
    %c0_i32_31 = arith.constant 0 : i32
    %62 = tpu.memref_slice %arg10[%c7_i32_30, %c0_i32_31] : memref<8x32xf32, #tpu.memory_space<vmem>> -> memref<1x32xf32, #tpu.memory_space<vmem>>
    %63 = tpu.memref_slice %arg11[%c0_i32_28] : memref<1x!tpu.dma_semaphore, #tpu.memory_space<semaphore_mem>> -> memref<1x!tpu.dma_semaphore, #tpu.memory_space<semaphore_mem>>
    %64 = tpu.memref_squeeze %63 : memref<1x!tpu.dma_semaphore, #tpu.memory_space<semaphore_mem>> -> memref<!tpu.dma_semaphore, #tpu.memory_space<semaphore_mem>>
    tpu.enqueue_dma source(%61 : memref<1x32xf32, #tpu.memory_space<any>>) target(%62 : memref<1x32xf32, #tpu.memory_space<vmem>>) target_semaphore(%64 : memref<!tpu.dma_semaphore, #tpu.memory_space<semaphore_mem>>)
    %c0 = arith.constant 0 : index
    %c0_32 = arith.constant 0 : index
    %65 = vector.load %arg5[%c0, %c0_32] : memref<8x32xf32, #tpu.memory_space<vmem>>, vector<8x32xf32>
    %c0_33 = arith.constant 0 : index
    %c0_34 = arith.constant 0 : index
    %c0_35 = arith.constant 0 : index
    %66 = vector.load %arg3[%c0_33, %c0_34, %c0_35] : memref<1x8x1xi32, #tpu.memory_space<vmem>>, vector<1x8x1xi32>
    %67 = vector.shape_cast %66 : vector<1x8x1xi32> to vector<8x1xi32>
    %c0_36 = arith.constant 0 : index
    %c0_37 = arith.constant 0 : index
    %68 = vector.load %arg6[%c0_36, %c0_37] : memref<2x32xf32, #tpu.memory_space<vmem>>, vector<2x32xf32>
    %69 = vector.extract_strided_slice %68 {offsets = [0, 0], sizes = [1, 32], strides = [1, 1]} : vector<2x32xf32> to vector<1x32xf32>
    %70 = vector.shape_cast %69 : vector<1x32xf32> to vector<1x32xf32>
    %71 = vector.broadcast %70 : vector<1x32xf32> to vector<8x32xf32>
    %c1_i32_38 = arith.constant 1 : i32
    %72 = vector.broadcast %c1_i32_38 : i32 to vector<8x1xi32>
    %73 = arith.cmpi eq, %67, %72 : vector<8x1xi32>
    %74 = vector.extract_strided_slice %68 {offsets = [1, 0], sizes = [1, 32], strides = [1, 1]} : vector<2x32xf32> to vector<1x32xf32>
    %75 = vector.shape_cast %73 : vector<8x1xi1> to vector<8x1xi1>
    %76 = vector.broadcast %75 : vector<8x1xi1> to vector<8x32xi1>
    %77 = vector.shape_cast %74 : vector<1x32xf32> to vector<1x32xf32>
    %78 = vector.broadcast %77 : vector<1x32xf32> to vector<8x32xf32>
    %79 = arith.select %76, %78, %71 : vector<8x32xi1>, vector<8x32xf32>
    %80 = arith.addf %65, %79 : vector<8x32xf32>
    %c0_i32_39 = arith.constant 0 : i32
    %81 = arith.addi %0, %c0_i32_39 : i32
    %82 = arith.index_cast %arg1 : i32 to index
    %83 = arith.index_cast %81 : i32 to index
    %84 = memref.load %arg2[%82, %83] : memref<2x8xi32, #tpu.memory_space<smem>>
    %c0_i32_40 = arith.constant 0 : i32
    %c0_i32_41 = arith.constant 0 : i32
    %85 = tpu.memref_slice %arg4[%84, %c0_i32_41] : memref<32x32xf32, #tpu.memory_space<any>> -> memref<1x32xf32, #tpu.memory_space<any>>
    %c0_i32_42 = arith.constant 0 : i32
    %c0_i32_43 = arith.constant 0 : i32
    %86 = tpu.memref_slice %arg10[%c0_i32_42, %c0_i32_43] : memref<8x32xf32, #tpu.memory_space<vmem>> -> memref<1x32xf32, #tpu.memory_space<vmem>>
    %87 = tpu.memref_slice %arg11[%c0_i32_40] : memref<1x!tpu.dma_semaphore, #tpu.memory_space<semaphore_mem>> -> memref<1x!tpu.dma_semaphore, #tpu.memory_space<semaphore_mem>>
    %88 = tpu.memref_squeeze %87 : memref<1x!tpu.dma_semaphore, #tpu.memory_space<semaphore_mem>> -> memref<!tpu.dma_semaphore, #tpu.memory_space<semaphore_mem>>
    tpu.wait_dma2 semaphore(%88 : memref<!tpu.dma_semaphore, #tpu.memory_space<semaphore_mem>>) src(%85 : memref<1x32xf32, #tpu.memory_space<any>>) dst(%86 : memref<1x32xf32, #tpu.memory_space<vmem>>)
    %c1_i32_44 = arith.constant 1 : i32
    %89 = arith.addi %0, %c1_i32_44 : i32
    %90 = arith.index_cast %arg1 : i32 to index
    %91 = arith.index_cast %89 : i32 to index
    %92 = memref.load %arg2[%90, %91] : memref<2x8xi32, #tpu.memory_space<smem>>
    %c0_i32_45 = arith.constant 0 : i32
    %c0_i32_46 = arith.constant 0 : i32
    %93 = tpu.memref_slice %arg4[%92, %c0_i32_46] : memref<32x32xf32, #tpu.memory_space<any>> -> memref<1x32xf32, #tpu.memory_space<any>>
    %c1_i32_47 = arith.constant 1 : i32
    %c0_i32_48 = arith.constant 0 : i32
    %94 = tpu.memref_slice %arg10[%c1_i32_47, %c0_i32_48] : memref<8x32xf32, #tpu.memory_space<vmem>> -> memref<1x32xf32, #tpu.memory_space<vmem>>
    %95 = tpu.memref_slice %arg11[%c0_i32_45] : memref<1x!tpu.dma_semaphore, #tpu.memory_space<semaphore_mem>> -> memref<1x!tpu.dma_semaphore, #tpu.memory_space<semaphore_mem>>
    %96 = tpu.memref_squeeze %95 : memref<1x!tpu.dma_semaphore, #tpu.memory_space<semaphore_mem>> -> memref<!tpu.dma_semaphore, #tpu.memory_space<semaphore_mem>>
    tpu.wait_dma2 semaphore(%96 : memref<!tpu.dma_semaphore, #tpu.memory_space<semaphore_mem>>) src(%93 : memref<1x32xf32, #tpu.memory_space<any>>) dst(%94 : memref<1x32xf32, #tpu.memory_space<vmem>>)
    %c2_i32_49 = arith.constant 2 : i32
    %97 = arith.addi %0, %c2_i32_49 : i32
    %98 = arith.index_cast %arg1 : i32 to index
    %99 = arith.index_cast %97 : i32 to index
    %100 = memref.load %arg2[%98, %99] : memref<2x8xi32, #tpu.memory_space<smem>>
    %c0_i32_50 = arith.constant 0 : i32
    %c0_i32_51 = arith.constant 0 : i32
    %101 = tpu.memref_slice %arg4[%100, %c0_i32_51] : memref<32x32xf32, #tpu.memory_space<any>> -> memref<1x32xf32, #tpu.memory_space<any>>
    %c2_i32_52 = arith.constant 2 : i32
    %c0_i32_53 = arith.constant 0 : i32
    %102 = tpu.memref_slice %arg10[%c2_i32_52, %c0_i32_53] : memref<8x32xf32, #tpu.memory_space<vmem>> -> memref<1x32xf32, #tpu.memory_space<vmem>>
    %103 = tpu.memref_slice %arg11[%c0_i32_50] : memref<1x!tpu.dma_semaphore, #tpu.memory_space<semaphore_mem>> -> memref<1x!tpu.dma_semaphore, #tpu.memory_space<semaphore_mem>>
    %104 = tpu.memref_squeeze %103 : memref<1x!tpu.dma_semaphore, #tpu.memory_space<semaphore_mem>> -> memref<!tpu.dma_semaphore, #tpu.memory_space<semaphore_mem>>
    tpu.wait_dma2 semaphore(%104 : memref<!tpu.dma_semaphore, #tpu.memory_space<semaphore_mem>>) src(%101 : memref<1x32xf32, #tpu.memory_space<any>>) dst(%102 : memref<1x32xf32, #tpu.memory_space<vmem>>)
    %c3_i32_54 = arith.constant 3 : i32
    %105 = arith.addi %0, %c3_i32_54 : i32
    %106 = arith.index_cast %arg1 : i32 to index
    %107 = arith.index_cast %105 : i32 to index
    %108 = memref.load %arg2[%106, %107] : memref<2x8xi32, #tpu.memory_space<smem>>
    %c0_i32_55 = arith.constant 0 : i32
    %c0_i32_56 = arith.constant 0 : i32
    %109 = tpu.memref_slice %arg4[%108, %c0_i32_56] : memref<32x32xf32, #tpu.memory_space<any>> -> memref<1x32xf32, #tpu.memory_space<any>>
    %c3_i32_57 = arith.constant 3 : i32
    %c0_i32_58 = arith.constant 0 : i32
    %110 = tpu.memref_slice %arg10[%c3_i32_57, %c0_i32_58] : memref<8x32xf32, #tpu.memory_space<vmem>> -> memref<1x32xf32, #tpu.memory_space<vmem>>
    %111 = tpu.memref_slice %arg11[%c0_i32_55] : memref<1x!tpu.dma_semaphore, #tpu.memory_space<semaphore_mem>> -> memref<1x!tpu.dma_semaphore, #tpu.memory_space<semaphore_mem>>
    %112 = tpu.memref_squeeze %111 : memref<1x!tpu.dma_semaphore, #tpu.memory_space<semaphore_mem>> -> memref<!tpu.dma_semaphore, #tpu.memory_space<semaphore_mem>>
    tpu.wait_dma2 semaphore(%112 : memref<!tpu.dma_semaphore, #tpu.memory_space<semaphore_mem>>) src(%109 : memref<1x32xf32, #tpu.memory_space<any>>) dst(%110 : memref<1x32xf32, #tpu.memory_space<vmem>>)
    %c4_i32_59 = arith.constant 4 : i32
    %113 = arith.addi %0, %c4_i32_59 : i32
    %114 = arith.index_cast %arg1 : i32 to index
    %115 = arith.index_cast %113 : i32 to index
    %116 = memref.load %arg2[%114, %115] : memref<2x8xi32, #tpu.memory_space<smem>>
    %c0_i32_60 = arith.constant 0 : i32
    %c0_i32_61 = arith.constant 0 : i32
    %117 = tpu.memref_slice %arg4[%116, %c0_i32_61] : memref<32x32xf32, #tpu.memory_space<any>> -> memref<1x32xf32, #tpu.memory_space<any>>
    %c4_i32_62 = arith.constant 4 : i32
    %c0_i32_63 = arith.constant 0 : i32
    %118 = tpu.memref_slice %arg10[%c4_i32_62, %c0_i32_63] : memref<8x32xf32, #tpu.memory_space<vmem>> -> memref<1x32xf32, #tpu.memory_space<vmem>>
    %119 = tpu.memref_slice %arg11[%c0_i32_60] : memref<1x!tpu.dma_semaphore, #tpu.memory_space<semaphore_mem>> -> memref<1x!tpu.dma_semaphore, #tpu.memory_space<semaphore_mem>>
    %120 = tpu.memref_squeeze %119 : memref<1x!tpu.dma_semaphore, #tpu.memory_space<semaphore_mem>> -> memref<!tpu.dma_semaphore, #tpu.memory_space<semaphore_mem>>
    tpu.wait_dma2 semaphore(%120 : memref<!tpu.dma_semaphore, #tpu.memory_space<semaphore_mem>>) src(%117 : memref<1x32xf32, #tpu.memory_space<any>>) dst(%118 : memref<1x32xf32, #tpu.memory_space<vmem>>)
    %c5_i32_64 = arith.constant 5 : i32
    %121 = arith.addi %0, %c5_i32_64 : i32
    %122 = arith.index_cast %arg1 : i32 to index
    %123 = arith.index_cast %121 : i32 to index
    %124 = memref.load %arg2[%122, %123] : memref<2x8xi32, #tpu.memory_space<smem>>
    %c0_i32_65 = arith.constant 0 : i32
    %c0_i32_66 = arith.constant 0 : i32
    %125 = tpu.memref_slice %arg4[%124, %c0_i32_66] : memref<32x32xf32, #tpu.memory_space<any>> -> memref<1x32xf32, #tpu.memory_space<any>>
    %c5_i32_67 = arith.constant 5 : i32
    %c0_i32_68 = arith.constant 0 : i32
    %126 = tpu.memref_slice %arg10[%c5_i32_67, %c0_i32_68] : memref<8x32xf32, #tpu.memory_space<vmem>> -> memref<1x32xf32, #tpu.memory_space<vmem>>
    %127 = tpu.memref_slice %arg11[%c0_i32_65] : memref<1x!tpu.dma_semaphore, #tpu.memory_space<semaphore_mem>> -> memref<1x!tpu.dma_semaphore, #tpu.memory_space<semaphore_mem>>
    %128 = tpu.memref_squeeze %127 : memref<1x!tpu.dma_semaphore, #tpu.memory_space<semaphore_mem>> -> memref<!tpu.dma_semaphore, #tpu.memory_space<semaphore_mem>>
    tpu.wait_dma2 semaphore(%128 : memref<!tpu.dma_semaphore, #tpu.memory_space<semaphore_mem>>) src(%125 : memref<1x32xf32, #tpu.memory_space<any>>) dst(%126 : memref<1x32xf32, #tpu.memory_space<vmem>>)
    %c6_i32_69 = arith.constant 6 : i32
    %129 = arith.addi %0, %c6_i32_69 : i32
    %130 = arith.index_cast %arg1 : i32 to index
    %131 = arith.index_cast %129 : i32 to index
    %132 = memref.load %arg2[%130, %131] : memref<2x8xi32, #tpu.memory_space<smem>>
    %c0_i32_70 = arith.constant 0 : i32
    %c0_i32_71 = arith.constant 0 : i32
    %133 = tpu.memref_slice %arg4[%132, %c0_i32_71] : memref<32x32xf32, #tpu.memory_space<any>> -> memref<1x32xf32, #tpu.memory_space<any>>
    %c6_i32_72 = arith.constant 6 : i32
    %c0_i32_73 = arith.constant 0 : i32
    %134 = tpu.memref_slice %arg10[%c6_i32_72, %c0_i32_73] : memref<8x32xf32, #tpu.memory_space<vmem>> -> memref<1x32xf32, #tpu.memory_space<vmem>>
    %135 = tpu.memref_slice %arg11[%c0_i32_70] : memref<1x!tpu.dma_semaphore, #tpu.memory_space<semaphore_mem>> -> memref<1x!tpu.dma_semaphore, #tpu.memory_space<semaphore_mem>>
    %136 = tpu.memref_squeeze %135 : memref<1x!tpu.dma_semaphore, #tpu.memory_space<semaphore_mem>> -> memref<!tpu.dma_semaphore, #tpu.memory_space<semaphore_mem>>
    tpu.wait_dma2 semaphore(%136 : memref<!tpu.dma_semaphore, #tpu.memory_space<semaphore_mem>>) src(%133 : memref<1x32xf32, #tpu.memory_space<any>>) dst(%134 : memref<1x32xf32, #tpu.memory_space<vmem>>)
    %c7_i32_74 = arith.constant 7 : i32
    %137 = arith.addi %0, %c7_i32_74 : i32
    %138 = arith.index_cast %arg1 : i32 to index
    %139 = arith.index_cast %137 : i32 to index
    %140 = memref.load %arg2[%138, %139] : memref<2x8xi32, #tpu.memory_space<smem>>
    %c0_i32_75 = arith.constant 0 : i32
    %c0_i32_76 = arith.constant 0 : i32
    %141 = tpu.memref_slice %arg4[%140, %c0_i32_76] : memref<32x32xf32, #tpu.memory_space<any>> -> memref<1x32xf32, #tpu.memory_space<any>>
    %c7_i32_77 = arith.constant 7 : i32
    %c0_i32_78 = arith.constant 0 : i32
    %142 = tpu.memref_slice %arg10[%c7_i32_77, %c0_i32_78] : memref<8x32xf32, #tpu.memory_space<vmem>> -> memref<1x32xf32, #tpu.memory_space<vmem>>
    %143 = tpu.memref_slice %arg11[%c0_i32_75] : memref<1x!tpu.dma_semaphore, #tpu.memory_space<semaphore_mem>> -> memref<1x!tpu.dma_semaphore, #tpu.memory_space<semaphore_mem>>
    %144 = tpu.memref_squeeze %143 : memref<1x!tpu.dma_semaphore, #tpu.memory_space<semaphore_mem>> -> memref<!tpu.dma_semaphore, #tpu.memory_space<semaphore_mem>>
    tpu.wait_dma2 semaphore(%144 : memref<!tpu.dma_semaphore, #tpu.memory_space<semaphore_mem>>) src(%141 : memref<1x32xf32, #tpu.memory_space<any>>) dst(%142 : memref<1x32xf32, #tpu.memory_space<vmem>>)
    %c0_79 = arith.constant 0 : index
    %c0_80 = arith.constant 0 : index
    %145 = vector.load %arg10[%c0_79, %c0_80] : memref<8x32xf32, #tpu.memory_space<vmem>>, vector<8x32xf32>
    %146 = arith.addf %80, %145 : vector<8x32xf32>
    %cst = arith.constant dense<0.000000e+00> : vector<8xf32>
    %147 = vector.multi_reduction <add>, %146, %cst [1] : vector<8x32xf32> to vector<8xf32>
    %148 = vector.shape_cast %147 : vector<8xf32> to vector<8x1xf32>
    %cst_81 = arith.constant 3.200000e+01 : f32
    %149 = vector.broadcast %cst_81 : f32 to vector<8x1xf32>
    %150 = arith.divf %148, %149 : vector<8x1xf32>
    %151 = vector.broadcast %150 : vector<8x1xf32> to vector<8x32xf32>
    %152 = arith.subf %146, %151 : vector<8x32xf32>
    %153 = arith.mulf %152, %152 : vector<8x32xf32>
    %cst_82 = arith.constant dense<0.000000e+00> : vector<8xf32>
    %154 = vector.multi_reduction <add>, %153, %cst_82 [1] : vector<8x32xf32> to vector<8xf32>
    %155 = vector.shape_cast %154 : vector<8xf32> to vector<8x1xf32>
    %cst_83 = arith.constant 3.200000e+01 : f32
    %156 = vector.broadcast %cst_83 : f32 to vector<8x1xf32>
    %157 = arith.divf %155, %156 : vector<8x1xf32>
    %cst_84 = arith.constant 9.99999974E-6 : f32
    %158 = vector.broadcast %cst_84 : f32 to vector<8x1xf32>
    %159 = arith.addf %157, %158 : vector<8x1xf32>
    %160 = math.rsqrt %159 : vector<8x1xf32>
    %161 = vector.broadcast %160 : vector<8x1xf32> to vector<8x32xf32>
    %162 = arith.mulf %152, %161 : vector<8x32xf32>
    %c0_85 = arith.constant 0 : index
    %c0_86 = arith.constant 0 : index
    %163 = vector.load %arg7[%c0_85, %c0_86] : memref<1x32xf32, #tpu.memory_space<vmem>>, vector<1x32xf32>
    %164 = vector.broadcast %163 : vector<1x32xf32> to vector<8x32xf32>
    %165 = arith.mulf %162, %164 : vector<8x32xf32>
    %c0_87 = arith.constant 0 : index
    %c0_88 = arith.constant 0 : index
    %166 = vector.load %arg8[%c0_87, %c0_88] : memref<1x32xf32, #tpu.memory_space<vmem>>, vector<1x32xf32>
    %167 = vector.broadcast %166 : vector<1x32xf32> to vector<8x32xf32>
    %168 = arith.addf %165, %167 : vector<8x32xf32>
    %c0_89 = arith.constant 0 : index
    %c0_90 = arith.constant 0 : index
    %c0_91 = arith.constant 0 : index
    %169 = vector.load %arg9[%c0_89, %c0_90, %c0_91] : memref<1x8x32xf32, #tpu.memory_space<vmem>>, vector<1x8x32xf32>
    %170 = vector.shape_cast %169 : vector<1x8x32xf32> to vector<8x32xf32>
    %171 = vector.shape_cast %168 : vector<8x32xf32> to vector<1x8x32xf32>
    tpu.vector_store %arg9[%c0_89, %c0_90, %c0_91], %171 {strides = array<i32>} : memref<1x8x32xf32, #tpu.memory_space<vmem>>, vector<1x8x32xf32>,
    return
  }
  func.func @transform_0(%arg0: i32, %arg1: i32, %arg2: memref<2x8xi32, #tpu.memory_space<smem>>) -> (i32, i32, i32) {
    %c0_i32 = arith.constant 0 : i32
    %c0_i32_0 = arith.constant 0 : i32
    return %arg1, %arg0, %c0_i32 : i32, i32, i32
  }
  func.func @transform_2(%arg0: i32, %arg1: i32, %arg2: memref<2x8xi32, #tpu.memory_space<smem>>) -> (i32, i32) {
    %c0_i32 = arith.constant 0 : i32
    %c0_i32_0 = arith.constant 0 : i32
    return %arg0, %c0_i32 : i32, i32
  }
  func.func @transform_3(%arg0: i32, %arg1: i32, %arg2: memref<2x8xi32, #tpu.memory_space<smem>>) -> (i32, i32) {
    %c0_i32 = arith.constant 0 : i32
    %c0_i32_0 = arith.constant 0 : i32
    %c0_i32_1 = arith.constant 0 : i32
    return %c0_i32, %c0_i32_0 : i32, i32
  }
  func.func @transform_4(%arg0: i32, %arg1: i32, %arg2: memref<2x8xi32, #tpu.memory_space<smem>>) -> (i32, i32) {
    %c0_i32 = arith.constant 0 : i32
    %c0_i32_0 = arith.constant 0 : i32
    %c0_i32_1 = arith.constant 0 : i32
    return %c0_i32, %c0_i32_0 : i32, i32
  }
  func.func @transform_5(%arg0: i32, %arg1: i32, %arg2: memref<2x8xi32, #tpu.memory_space<smem>>) -> (i32, i32) {
    %c0_i32 = arith.constant 0 : i32
    %c0_i32_0 = arith.constant 0 : i32
    %c0_i32_1 = arith.constant 0 : i32
    return %c0_i32, %c0_i32_0 : i32, i32
  }
  func.func @transform_6(%arg0: i32, %arg1: i32, %arg2: memref<2x8xi32, #tpu.memory_space<smem>>) -> (i32, i32, i32) {
    %c0_i32 = arith.constant 0 : i32
    %c0_i32_0 = arith.constant 0 : i32
    return %arg1, %arg0, %c0_i32 : i32, i32, i32
  }
}

</mosaic_0001>

<llo_original>
// kernel: tpu_custom_call.1
$region0: #{tpu_custom_call.1}
  #allocation0 [shape = 'u32[]', space=smem, size = 0x4, offset = 0x4, fixed_abs, tag = 'smem constant byte address 0x4 - core index']
  #allocation1 [shape = 'u32[144,128]{1,0:T(1,128)}', space=vmem, size = 0x12000, scoped, tag = 'internal scratch']
  #allocation2 [shape = 'f32[8,32]{1,0:T(8,128)}', space=vmem, size = 0x1000, scoped, tag = 'scratch operand']
  #allocation3 [shape = 's32[1]{0}', space=sflag, size = 0x4, scoped, tag = 'scratch operand']
  #allocation4 [shape = 's32[1]{0}', space=sflag, size = 0x4, scoped, tag = 'scoped memory for tpu_custom_call.1']
  #allocation5 [shape = 'u8[1024]{0}', space=smem, size = 0x400, scoped, tag = 'prefetched SMEM operand 0']
  #allocation8 [shape = 's32[]', space=sflag, size = 0x4, offset = 0, fixed_abs, tag = 'sflag constant byte address 0x0 - dummy sync flag']
  #allocation9 [shape = 's32[]', space=sflag, size = 0x4, offset = 0, fixed_abs, tag = 'sflag constant byte address 0x0 - dummy sync flag']
  #allocation10 [shape = 's32[]', space=sflag, size = 0x4, offset = 0, fixed_abs, tag = 'sflag constant byte address 0x0 - dummy sync flag']
  #allocation11 [shape = 's32[]', space=sflag, size = 0x4, offset = 0, fixed_abs, tag = 'sflag constant byte address 0x0 - dummy sync flag']
  #allocation12 [shape = 's32[]', space=sflag, size = 0x4, offset = 0, fixed_abs, tag = 'sflag constant byte address 0x0 - dummy sync flag']
  #allocation13 [shape = 's32[]', space=sflag, size = 0x4, offset = 0, fixed_abs, tag = 'sflag constant byte address 0x0 - dummy sync flag']
  #allocation14 [shape = 's32[]', space=sflag, size = 0x4, offset = 0, fixed_abs, tag = 'sflag constant byte address 0x0 - dummy sync flag']
  #allocation15 [shape = 's32[]', space=sflag, size = 0x4, offset = 0, fixed_abs, tag = 'sflag constant byte address 0x0 - dummy sync flag']
  %s0 = inlined_call_operand.vmem [shape: s32[2,8], index: 0, kind: input, shape index: {}]
  %s1 = inlined_call_operand.vmem [shape: s32[2,8,1], index: 1, kind: input, shape index: {}]
  %s2 = inlined_call_operand.vmem [shape: f32[32,32], index: 2, kind: input, shape index: {}]
  %s3 = inlined_call_operand.vmem [shape: f32[64,32], index: 3, kind: input, shape index: {}]
  %s4 = inlined_call_operand.vmem [shape: f32[2,32], index: 4, kind: input, shape index: {}]
  %s5 = inlined_call_operand.vmem [shape: f32[1,32], index: 5, kind: input, shape index: {}]
  %s6 = inlined_call_operand.vmem [shape: f32[1,32], index: 6, kind: input, shape index: {}]
  %s7 = inlined_call_operand.hbm [shape: f32[2,8,32], index: 7, kind: output, shape index: {}]
  %s8 = sld [smem:[#allocation0]]
  $region293: #{tpu_custom_call.1} parent=0
    _
  %s10 = ssub.s32 1, %s8
  %s11 = scalar_select 0, %s10, %s8
  %s12 = sshll.u32 %s0, 4
  %s13 = int_to_ptr.vmem [resolvable:$true] %s12
  %15 = dma.vmem_to_smem %s13, 32, [#allocation5], [#allocation4]
  %16 = dma.done [#allocation4], 32
  %17 = sfence
  $region1: #{tpu_custom_call.1} parent=0
    #allocation6 [shape = 'u8[8192]{0}', space=vmem, size = 0x2000, scoped, tag = 'output window, operand 0']
    #allocation7 [shape = 's32[2]{0}', space=sflag, size = 0x8, scoped, tag = 'scoped memory for tpu_custom_call.1']
    %18 = vsyncpa [#allocation7], 0
    %s19 = scalar_lea.sflag [#allocation7], 1
    %20 = vsyncpa %s19, 0
    loop: start=0, step=1, limit=4
    $region2: #{tpu_custom_call.1} parent=1 // loop_pre_header
      _
    $region3: #{tpu_custom_call.1} parent=1 // loop_header
      %s22 = sphi 0, %s26
      %p23 = scmp.ge.s32.totalorder %s22, 4
      %s29 = sphi 0, %s41
      %s30 = sphi 0, %s37
      %s31 = sphi 0, %s29
      %s32 = sphi 0, %s30
      %s33 = sphi 0, %s31
      %s34 = sphi 0, %s32
      %s46 = sphi 0, %s48
      %s49 = sphi 0, %s46
      %s50 = sphi 0, %s49
      %s66 = sphi 0, %s50
      %s72 = sphi 0, %s74
      %s75 = sphi 0, %s72
      %s76 = sphi 0, %s75
      %s92 = sphi 0, %s76
      %s96 = sphi 0, %s96
      %s98 = sphi 0, %s96
      %s99 = sphi 0, %s98
      %s113 = sphi 0, %s99
      %s117 = sphi 0, %s117
      %s119 = sphi 0, %s117
      %s120 = sphi 0, %s119
      %s134 = sphi 0, %s120
      %s138 = sphi 0, %s138
      %s140 = sphi 0, %s138
      %s141 = sphi 0, %s140
      %s155 = sphi 0, %s141
      %s163 = sphi 0, %s165
      %s166 = sphi 0, %s163
      %s167 = sphi 0, %s166
      %s183 = sphi 0, %s167
    $region4: #{tpu_custom_call.1} parent=1 // loop_header_branch
      %25 = sbr.rel (%p23) target = $region8
    $region5: #{tpu_custom_call.1} parent=1 // loop_body
      %s27 = ssub.s32 %s22, 1
      %s28 = ssub.s32 %s22, 2
      %s35 = sadd.s32 1, %s30
      %p36 = scmp.ge.s32.totalorder %s35, 2
      %s37 = scalar_select %p36, 0, %s35
      %s38 = sadd.s32 1, %s29
      %s39 = scalar_select %p36, %s38, %s29
      %p40 = scmp.ge.s32.totalorder %s39, 1
      %s41 = scalar_select %p40, 0, %s39
      %s42 = ssub.s32 %s30, %s37
      %s43 = ssub.s32 %s29, %s41
      %s44 = sor.u32 %s42, %s43
      %p45 = scmp.eq.s32.totalorder %s44, 0
      %s47 = sadd.s32 %s46, 1
      %s48 = scalar_select %p45, %s46, %s47
      %p51 = pneg %p45
      %p52 = scmp.eq.s32.totalorder %s22, 1
      %p53 = por %p51, %p52
      %p54 = scmp.ne.s32.totalorder %s46, %s49
      %p55 = scmp.eq.s32.totalorder %s22, 0
      %p56 = por %p54, %p55
      %p57 = scmp.ne.s32.totalorder %s46, %s49
      %p58 = scmp.eq.s32.totalorder %s27, 1
      %p59 = por %p57, %p58
      %p60 = scmp.ne.s32.totalorder %s49, %s50
      %p61 = scmp.eq.s32.totalorder %s27, 0
      %p62 = por %p60, %p61
      %p63 = scmp.ne.s32.totalorder %s49, %s50
      %p64 = scmp.eq.s32.totalorder %s28, 1
      %p65 = por %p63, %p64
      %p67 = scmp.ne.s32.totalorder %s50, %s66
      %p68 = scmp.eq.s32.totalorder %s28, 0
      %p69 = por %p67, %p68
      %s70 = ssub.s32 %s29, %s41
      %p71 = scmp.eq.s32.totalorder %s70, 0
      %s73 = sadd.s32 %s72, 1
      %s74 = scalar_select %p71, %s72, %s73
      %p77 = pneg %p71
      %p78 = scmp.eq.s32.totalorder %s22, 1
      %p79 = por %p77, %p78
      %p80 = scmp.ne.s32.totalorder %s72, %s75
      %p81 = scmp.eq.s32.totalorder %s22, 0
      %p82 = por %p80, %p81
      %p83 = scmp.ne.s32.totalorder %s72, %s75
      %p84 = scmp.eq.s32.totalorder %s27, 1
      %p85 = por %p83, %p84
      %p86 = scmp.ne.s32.totalorder %s75, %s76
      %p87 = scmp.eq.s32.totalorder %s27, 0
      %p88 = por %p86, %p87
      %p89 = scmp.ne.s32.totalorder %s75, %s76
      %p90 = scmp.eq.s32.totalorder %s28, 1
      %p91 = por %p89, %p90
      %p93 = scmp.ne.s32.totalorder %s76, %s92
      %p94 = scmp.eq.s32.totalorder %s28, 0
      %p95 = por %p93, %p94
      %s97 = sadd.s32 %s96, 1
      %p100 = scmp.eq.s32.totalorder %s22, 1
      %p101 = scmp.ne.s32.totalorder %s96, %s98
      %p102 = scmp.eq.s32.totalorder %s22, 0
      %p103 = por %p101, %p102
      %p104 = scmp.ne.s32.totalorder %s96, %s98
      %p105 = scmp.eq.s32.totalorder %s27, 1
      %p106 = por %p104, %p105
      %p107 = scmp.ne.s32.totalorder %s98, %s99
      %p108 = scmp.eq.s32.totalorder %s27, 0
      %p109 = por %p107, %p108
      %p110 = scmp.ne.s32.totalorder %s98, %s99
      %p111 = scmp.eq.s32.totalorder %s28, 1
      %p112 = por %p110, %p111
      %p114 = scmp.ne.s32.totalorder %s99, %s113
      %p115 = scmp.eq.s32.totalorder %s28, 0
      %p116 = por %p114, %p115
      %s118 = sadd.s32 %s117, 1
      %p121 = scmp.eq.s32.totalorder %s22, 1
      %p122 = scmp.ne.s32.totalorder %s117, %s119
      %p123 = scmp.eq.s32.totalorder %s22, 0
      %p124 = por %p122, %p123
      %p125 = scmp.ne.s32.totalorder %s117, %s119
      %p126 = scmp.eq.s32.totalorder %s27, 1
      %p127 = por %p125, %p126
      %p128 = scmp.ne.s32.totalorder %s119, %s120
      %p129 = scmp.eq.s32.totalorder %s27, 0
      %p130 = por %p128, %p129
      %p131 = scmp.ne.s32.totalorder %s119, %s120
      %p132 = scmp.eq.s32.totalorder %s28, 1
      %p133 = por %p131, %p132
      %p135 = scmp.ne.s32.totalorder %s120, %s134
      %p136 = scmp.eq.s32.totalorder %s28, 0
      %p137 = por %p135, %p136
      %s139 = sadd.s32 %s138, 1
      %p142 = scmp.eq.s32.totalorder %s22, 1
      %p143 = scmp.ne.s32.totalorder %s138, %s140
      %p144 = scmp.eq.s32.totalorder %s22, 0
      %p145 = por %p143, %p144
      %p146 = scmp.ne.s32.totalorder %s138, %s140
      %p147 = scmp.eq.s32.totalorder %s27, 1
      %p148 = por %p146, %p147
      %p149 = scmp.ne.s32.totalorder %s140, %s141
      %p150 = scmp.eq.s32.totalorder %s27, 0
      %p151 = por %p149, %p150
      %p152 = scmp.ne.s32.totalorder %s140, %s141
      %p153 = scmp.eq.s32.totalorder %s28, 1
      %p154 = por %p152, %p153
      %p156 = scmp.ne.s32.totalorder %s141, %s155
      %p157 = scmp.eq.s32.totalorder %s28, 0
      %p158 = por %p156, %p157
      %s159 = ssub.s32 %s30, %s37
      %s160 = ssub.s32 %s29, %s41
      %s161 = sor.u32 %s159, %s160
      %p162 = scmp.eq.s32.totalorder %s161, 0
      %s164 = sadd.s32 %s163, 1
      %s165 = scalar_select %p162, %s163, %s164
      %p168 = pneg %p162
      %p169 = scmp.eq.s32.totalorder %s22, 1
      %p170 = por %p168, %p169
      %p171 = scmp.ne.s32.totalorder %s163, %s166
      %p172 = scmp.eq.s32.totalorder %s22, 0
      %p173 = por %p171, %p172
      %p174 = scmp.ne.s32.totalorder %s163, %s166
      %p175 = scmp.eq.s32.totalorder %s27, 1
      %p176 = por %p174, %p175
      %p177 = scmp.ne.s32.totalorder %s166, %s167
      %p178 = scmp.eq.s32.totalorder %s27, 0
      %p179 = por %p177, %p178
      %p180 = scmp.ne.s32.totalorder %s166, %s167
      %p181 = scmp.eq.s32.totalorder %s28, 1
      %p182 = por %p180, %p181
      %p184 = scmp.ne.s32.totalorder %s167, %s183
      %p185 = scmp.eq.s32.totalorder %s28, 0
      %p186 = por %p184, %p185
      %p187 = scmp.le.s32.totalorder 1, %s22
      %p188 = scmp.lt.s32.totalorder %s22, 3
      %p189 = pnand %p187, %p188
      %p190 = pneg %p189
      // Predicated region
      $region9: #{tpu_custom_call.1} parent=5 // pred_check
        _
      $region10: #{tpu_custom_call.1} parent=5 // pred_check_branch
        %192 = sbr.rel (%p189) target = $region12
      $region11: #{tpu_custom_call.1} parent=5 // pred_region
        %s193 = ssub.s32 %s22, 1
        // Predicated region
        $region13: #{tpu_custom_call.1} parent=11 // pred_check
          %p194 = pneg %p88
        $region14: #{tpu_custom_call.1} parent=11 // pred_check_branch
          %196 = sbr.rel (%p194) target = $region16
        $region15: #{tpu_custom_call.1} parent=11 // pred_region
          %p197 = scmp.lt.s32.totalorder %s31, 7
          %s198 = scalar_select %p197, %s31, 7
          %s199 = smul.addr %s198, 8
          %s200 = scalar_lea.vmem %s3, %s199
        $region16: #{tpu_custom_call.1} parent=11 // pred_fallthru
          _
        // Predicated region
        $region17: #{tpu_custom_call.1} parent=11 // pred_check
          %p201 = pneg %p109
        $region18: #{tpu_custom_call.1} parent=11 // pred_check_branch
          %203 = sbr.rel (%p201) target = $region20
        $region19: #{tpu_custom_call.1} parent=11 // pred_region
          _
        $region20: #{tpu_custom_call.1} parent=11 // pred_fallthru
          _
        // Predicated region
        $region21: #{tpu_custom_call.1} parent=11 // pred_check
          %p204 = pneg %p130
        $region22: #{tpu_custom_call.1} parent=11 // pred_check_branch
          %206 = sbr.rel (%p204) target = $region24
        $region23: #{tpu_custom_call.1} parent=11 // pred_region
          _
        $region24: #{tpu_custom_call.1} parent=11 // pred_fallthru
          _
        // Predicated region
        $region25: #{tpu_custom_call.1} parent=11 // pred_check
          %p207 = pneg %p151
        $region26: #{tpu_custom_call.1} parent=11 // pred_check_branch
          %209 = sbr.rel (%p207) target = $region28
        $region27: #{tpu_custom_call.1} parent=11 // pred_region
          _
        $region28: #{tpu_custom_call.1} parent=11 // pred_fallthru
          _
      $region12: #{tpu_custom_call.1} parent=5 // pred_fallthru
        _
      %p210 = scmp.lt.s32.totalorder %s22, 2
      // Predicated region
      $region29: #{tpu_custom_call.1} parent=5 // pred_check
        %p211 = pneg %p210
      $region30: #{tpu_custom_call.1} parent=5 // pred_check_branch
        %213 = sbr.rel (%p211) target = $region32
      $region31: #{tpu_custom_call.1} parent=5 // pred_region
        // Predicated region
        $region33: #{tpu_custom_call.1} parent=31 // pred_check
          %p214 = pneg %p56
        $region34: #{tpu_custom_call.1} parent=31 // pred_check_branch
          %216 = sbr.rel (%p214) target = $region36
        $region35: #{tpu_custom_call.1} parent=31 // pred_region
          %p217 = scmp.lt.s32.totalorder %s30, 1
          %s218 = scalar_select %p217, %s30, 1
          %p219 = scmp.lt.s32.totalorder %s29, 0
          %s220 = scalar_select %p219, %s29, 0
          %s221 = sadd.s32 %s220, %s218
          %s222 = smul.addr %s221, 8
          %s223 = scalar_lea.vmem %s1, %s222
        $region36: #{tpu_custom_call.1} parent=31 // pred_fallthru
          _
      $region32: #{tpu_custom_call.1} parent=5 // pred_fallthru
        _
      %p224 = scmp.le.s32.totalorder 1, %s22
      %p225 = scmp.lt.s32.totalorder %s22, 3
      %p226 = pnand %p224, %p225
      %p227 = pneg %p226
      // Predicated region
      $region37: #{tpu_custom_call.1} parent=5 // pred_check
        _
      $region38: #{tpu_custom_call.1} parent=5 // pred_check_branch
        %229 = sbr.rel (%p226) target = $region40
      $region39: #{tpu_custom_call.1} parent=5 // pred_region
        %s230 = ssub.s32 %s22, 1
        %p231 = scmp.lt.s32.totalorder %s32, 1
        %s232 = scalar_select %p231, %s32, 1
        %p233 = scmp.lt.s32.totalorder %s31, 0
        %s234 = scalar_select %p233, %s31, 0
        %s235 = sadd.s32 %s234, %s232
        %s236 = smul.addr %s235, 8
        %s237 = scalar_lea.vmem %s1, %s236
        %p238 = pneg %p62
        %p239 = pneg %p59
        %p240 = scmp.lt.s32.totalorder %s31, 7
        %s241 = scalar_select %p240, %s31, 7
        %s242 = smul.addr %s241, 8
        %s243 = scalar_lea.vmem %s3, %s242
        %p244 = pneg %p88
        %p245 = pneg %p85
        %p246 = pneg %p109
        %p247 = pneg %p106
        %p248 = pneg %p130
        %p249 = pneg %p127
        %p250 = pneg %p151
        %p251 = pneg %p148
        %p252 = pneg %p179
        %p253 = pneg %p176
        %s254 = sand.u32 %s166, 1
        %s255 = scalar_lea.sflag [#allocation7], %s254
        %s256 = sand.u32 %s166, 1
        %s257 = smul.addr %s256, 8
        %s258 = scalar_lea.vmem [#allocation6], %s257
        %p259 = scmp.lt.s32.totalorder %s32, 1
        %s260 = scalar_select %p259, %s32, 1
        %p261 = scmp.lt.s32.totalorder %s31, 0
        %s262 = scalar_select %p261, %s31, 0
        %s263 = sadd.s32 %s262, %s260
        %s264 = smul.addr %s263, 8
        %s265 = scalar_lea.vmem %s1, %s264
        %p266 = scmp.lt.s32.totalorder %s31, 7
        %s267 = scalar_select %p266, %s31, 7
        %s268 = smul.addr %s267, 8
        %s269 = scalar_lea.vmem %s3, %s268
        %s270 = smul.u32 %s31, 8
        %s271 = sshra.s32 %s270, 7
        %s272 = sand.u32 %s270, 127
        %s273 = sadd.s32 %s271, %s32
        %s274 = smul.u32 %s273, 128
        %s275 = sshra.s32 %s270, 7
        %s276 = sand.u32 %s270, 127
        %s277 = sadd.s32 %s274, %s276
        %s278 = sld [smem:[#allocation5 + %s277]]
        %s279 = scalar_lea.vmem %s2, %s278
        %p281 = scmp.lt.u32.totalorder 1, 8
        %p282 = pneg %p281
        // Predicated region
        $region41: #{tpu_custom_call.1} parent=39 // pred_check
          _
        $region42: #{tpu_custom_call.1} parent=39 // pred_check_branch
          %284 = sbr.rel (%p281) target = $region44
        $region43: #{tpu_custom_call.1} parent=39 // pred_region
          %s299 = sand.u32 1, 7
          %p300 = scmp.eq.s32.totalorder %s299, 0
          %p301 = pneg %p300
          // Predicated region
          $region56: #{tpu_custom_call.1} parent=43 // pred_check
            _
          $region57: #{tpu_custom_call.1} parent=43 // pred_check_branch
            %303 = sbr.rel (%p300) target = $region59
          $region58: #{tpu_custom_call.1} parent=43 // pred_region
            %s304 = sand.u32 1, 7
            %s305 = ssub.s32 1, %s304
            %s306 = scalar_lea.vmem %s279, %s305
            %s307 = ssub.s32 1, %s304
            %s308 = scalar_lea.vmem [#allocation2], %s307
            %s309 = sshllo.u32 0, %s304
            loop: start=0, step=1, limit=1
            $region60: #{tpu_custom_call.1} parent=58 // loop_pre_header
              _
            $region61: #{tpu_custom_call.1} parent=58 // loop_header
              %s311 = sphi 0, %s315
              %p312 = scmp.ge.s32.totalorder %s311, 1
              %s316 = sphi %s306, %s306
              %s317 = sphi %s308, %s308
            $region62: #{tpu_custom_call.1} parent=58 // loop_header_branch
              %314 = sbr.rel (%p312) target = $region66
            $region63: #{tpu_custom_call.1} parent=58 // loop_body
              %v318 = vld [vmem:[%s316] sm:%s309]
              %319 = vst [vmem:[%s317] sm:%s309] %v318
            $region64: #{tpu_custom_call.1} parent=58 // loop_footer
              %s315 = sadd.s32 1, %s311
            $region65: #{tpu_custom_call.1} parent=58 // loop_footer_branch
              %310 = sbr.rel target = $region61
            $region66: #{tpu_custom_call.1} parent=58 // loop_exit
              _
          $region59: #{tpu_custom_call.1} parent=43 // pred_fallthru
            _
        $region44: #{tpu_custom_call.1} parent=39 // pred_fallthru
          _
        // Predicated region
        $region45: #{tpu_custom_call.1} parent=39 // pred_check
          %p285 = pneg %p281
        $region46: #{tpu_custom_call.1} parent=39 // pred_check_branch
          %287 = sbr.rel (%p285) target = $region48
        $region47: #{tpu_custom_call.1} parent=39 // pred_region
          %s288 = sshllo.u32 0, 1
          loop: start=0, step=1, limit=1
          $region49: #{tpu_custom_call.1} parent=47 // loop_pre_header
            _
          $region50: #{tpu_custom_call.1} parent=47 // loop_header
            %s290 = sphi 0, %s294
            %p291 = scmp.ge.s32.totalorder %s290, 1
            %s295 = sphi %s279, %s279
            %s296 = sphi [#allocation2], [#allocation2]
          $region51: #{tpu_custom_call.1} parent=47 // loop_header_branch
            %293 = sbr.rel (%p291) target = $region55
          $region52: #{tpu_custom_call.1} parent=47 // loop_body
            %v297 = vld [vmem:[%s295] sm:%s288]
            %298 = vst [vmem:[%s296] sm:%s288] %v297
          $region53: #{tpu_custom_call.1} parent=47 // loop_footer
            %s294 = sadd.s32 1, %s290
          $region54: #{tpu_custom_call.1} parent=47 // loop_footer_branch
            %289 = sbr.rel target = $region50
          $region55: #{tpu_custom_call.1} parent=47 // loop_exit
            _
        $region48: #{tpu_custom_call.1} parent=39 // pred_fallthru
          _
        // Predicated region
        $region67: #{tpu_custom_call.1} parent=39 // pred_check
          _
        $region68: #{tpu_custom_call.1} parent=39 // pred_check_branch
          %322 = sbr.rel (0) target = $region70
        $region69: #{tpu_custom_call.1} parent=39 // pred_region
          %323 = vsyncadd [#allocation3], 16
        $region70: #{tpu_custom_call.1} parent=39 // pred_fallthru
          _
        %s324 = sadd.s32 %s270, 1
        %s325 = sshra.s32 %s324, 7
        %s326 = sand.u32 %s324, 127
        %s327 = sadd.s32 %s325, %s32
        %s328 = smul.u32 %s327, 128
        %s329 = sshra.s32 %s324, 7
        %s330 = sand.u32 %s324, 127
        %s331 = sadd.s32 %s328, %s330
        %s332 = sld [smem:[#allocation5 + %s331]]
        %s333 = scalar_lea.vmem %s2, %s332
        %s334 = scalar_lea.vmem [#allocation2], 1
        %p336 = scmp.lt.u32.totalorder 1, 8
        %p337 = pneg %p336
        // Predicated region
        $region71: #{tpu_custom_call.1} parent=39 // pred_check
          _
        $region72: #{tpu_custom_call.1} parent=39 // pred_check_branch
          %339 = sbr.rel (%p336) target = $region74
        $region73: #{tpu_custom_call.1} parent=39 // pred_region
          %s354 = sand.u32 1, 7
          %p355 = scmp.eq.s32.totalorder %s354, 0
          %p356 = pneg %p355
          // Predicated region
          $region86: #{tpu_custom_call.1} parent=73 // pred_check
            _
          $region87: #{tpu_custom_call.1} parent=73 // pred_check_branch
            %358 = sbr.rel (%p355) target = $region89
          $region88: #{tpu_custom_call.1} parent=73 // pred_region
            %s359 = sand.u32 1, 7
            %s360 = ssub.s32 1, %s359
            %s361 = scalar_lea.vmem %s333, %s360
            %s362 = ssub.s32 1, %s359
            %s363 = scalar_lea.vmem %s334, %s362 [#allocation2]
            %s364 = sshllo.u32 0, %s359
            loop: start=0, step=1, limit=1
            $region90: #{tpu_custom_call.1} parent=88 // loop_pre_header
              _
            $region91: #{tpu_custom_call.1} parent=88 // loop_header
              %s366 = sphi 0, %s370
              %p367 = scmp.ge.s32.totalorder %s366, 1
              %s371 = sphi %s361, %s361
              %s372 = sphi %s363, %s363
            $region92: #{tpu_custom_call.1} parent=88 // loop_header_branch
              %369 = sbr.rel (%p367) target = $region96
            $region93: #{tpu_custom_call.1} parent=88 // loop_body
              %v373 = vld [vmem:[%s371] sm:%s364]
              %374 = vst [vmem:[%s372] sm:%s364] %v373
            $region94: #{tpu_custom_call.1} parent=88 // loop_footer
              %s370 = sadd.s32 1, %s366
            $region95: #{tpu_custom_call.1} parent=88 // loop_footer_branch
              %365 = sbr.rel target = $region91
            $region96: #{tpu_custom_call.1} parent=88 // loop_exit
              _
          $region89: #{tpu_custom_call.1} parent=73 // pred_fallthru
            _
        $region74: #{tpu_custom_call.1} parent=39 // pred_fallthru
          _
        // Predicated region
        $region75: #{tpu_custom_call.1} parent=39 // pred_check
          %p340 = pneg %p336
        $region76: #{tpu_custom_call.1} parent=39 // pred_check_branch
          %342 = sbr.rel (%p340) target = $region78
        $region77: #{tpu_custom_call.1} parent=39 // pred_region
          %s343 = sshllo.u32 0, 1
          loop: start=0, step=1, limit=1
          $region79: #{tpu_custom_call.1} parent=77 // loop_pre_header
            _
          $region80: #{tpu_custom_call.1} parent=77 // loop_header
            %s345 = sphi 0, %s349
            %p346 = scmp.ge.s32.totalorder %s345, 1
            %s350 = sphi %s333, %s333
            %s351 = sphi %s334, %s334
          $region81: #{tpu_custom_call.1} parent=77 // loop_header_branch
            %348 = sbr.rel (%p346) target = $region85
          $region82: #{tpu_custom_call.1} parent=77 // loop_body
            %v352 = vld [vmem:[%s350] sm:%s343]
            %353 = vst [vmem:[%s351] sm:%s343] %v352
          $region83: #{tpu_custom_call.1} parent=77 // loop_footer
            %s349 = sadd.s32 1, %s345
          $region84: #{tpu_custom_call.1} parent=77 // loop_footer_branch
            %344 = sbr.rel target = $region80
          $region85: #{tpu_custom_call.1} parent=77 // loop_exit
            _
        $region78: #{tpu_custom_call.1} parent=39 // pred_fallthru
          _
        // Predicated region
        $region97: #{tpu_custom_call.1} parent=39 // pred_check
          _
        $region98: #{tpu_custom_call.1} parent=39 // pred_check_branch
          %377 = sbr.rel (0) target = $region100
        $region99: #{tpu_custom_call.1} parent=39 // pred_region
          %378 = vsyncadd [#allocation3], 16
        $region100: #{tpu_custom_call.1} parent=39 // pred_fallthru
          _
        %s379 = sadd.s32 %s270, 2
        %s380 = sshra.s32 %s379, 7
        %s381 = sand.u32 %s379, 127
        %s382 = sadd.s32 %s380, %s32
        %s383 = smul.u32 %s382, 128
        %s384 = sshra.s32 %s379, 7
        %s385 = sand.u32 %s379, 127
        %s386 = sadd.s32 %s383, %s385
        %s387 = sld [smem:[#allocation5 + %s386]]
        %s388 = scalar_lea.vmem %s2, %s387
        %s389 = scalar_lea.vmem [#allocation2], 2
        %p391 = scmp.lt.u32.totalorder 1, 8
        %p392 = pneg %p391
        // Predicated region
        $region101: #{tpu_custom_call.1} parent=39 // pred_check
          _
        $region102: #{tpu_custom_call.1} parent=39 // pred_check_branch
          %394 = sbr.rel (%p391) target = $region104
        $region103: #{tpu_custom_call.1} parent=39 // pred_region
          %s409 = sand.u32 1, 7
          %p410 = scmp.eq.s32.totalorder %s409, 0
          %p411 = pneg %p410
          // Predicated region
          $region116: #{tpu_custom_call.1} parent=103 // pred_check
            _
          $region117: #{tpu_custom_call.1} parent=103 // pred_check_branch
            %413 = sbr.rel (%p410) target = $region119
          $region118: #{tpu_custom_call.1} parent=103 // pred_region
            %s414 = sand.u32 1, 7
            %s415 = ssub.s32 1, %s414
            %s416 = scalar_lea.vmem %s388, %s415
            %s417 = ssub.s32 1, %s414
            %s418 = scalar_lea.vmem %s389, %s417 [#allocation2]
            %s419 = sshllo.u32 0, %s414
            loop: start=0, step=1, limit=1
            $region120: #{tpu_custom_call.1} parent=118 // loop_pre_header
              _
            $region121: #{tpu_custom_call.1} parent=118 // loop_header
              %s421 = sphi 0, %s425
              %p422 = scmp.ge.s32.totalorder %s421, 1
              %s426 = sphi %s416, %s416
              %s427 = sphi %s418, %s418
            $region122: #{tpu_custom_call.1} parent=118 // loop_header_branch
              %424 = sbr.rel (%p422) target = $region126
            $region123: #{tpu_custom_call.1} parent=118 // loop_body
              %v428 = vld [vmem:[%s426] sm:%s419]
              %429 = vst [vmem:[%s427] sm:%s419] %v428
            $region124: #{tpu_custom_call.1} parent=118 // loop_footer
              %s425 = sadd.s32 1, %s421
            $region125: #{tpu_custom_call.1} parent=118 // loop_footer_branch
              %420 = sbr.rel target = $region121
            $region126: #{tpu_custom_call.1} parent=118 // loop_exit
              _
          $region119: #{tpu_custom_call.1} parent=103 // pred_fallthru
            _
        $region104: #{tpu_custom_call.1} parent=39 // pred_fallthru
          _
        // Predicated region
        $region105: #{tpu_custom_call.1} parent=39 // pred_check
          %p395 = pneg %p391
        $region106: #{tpu_custom_call.1} parent=39 // pred_check_branch
          %397 = sbr.rel (%p395) target = $region108
        $region107: #{tpu_custom_call.1} parent=39 // pred_region
          %s398 = sshllo.u32 0, 1
          loop: start=0, step=1, limit=1
          $region109: #{tpu_custom_call.1} parent=107 // loop_pre_header
            _
          $region110: #{tpu_custom_call.1} parent=107 // loop_header
            %s400 = sphi 0, %s404
            %p401 = scmp.ge.s32.totalorder %s400, 1
            %s405 = sphi %s388, %s388
            %s406 = sphi %s389, %s389
          $region111: #{tpu_custom_call.1} parent=107 // loop_header_branch
            %403 = sbr.rel (%p401) target = $region115
          $region112: #{tpu_custom_call.1} parent=107 // loop_body
            %v407 = vld [vmem:[%s405] sm:%s398]
            %408 = vst [vmem:[%s406] sm:%s398] %v407
          $region113: #{tpu_custom_call.1} parent=107 // loop_footer
            %s404 = sadd.s32 1, %s400
          $region114: #{tpu_custom_call.1} parent=107 // loop_footer_branch
            %399 = sbr.rel target = $region110
          $region115: #{tpu_custom_call.1} parent=107 // loop_exit
            _
        $region108: #{tpu_custom_call.1} parent=39 // pred_fallthru
          _
        // Predicated region
        $region127: #{tpu_custom_call.1} parent=39 // pred_check
          _
        $region128: #{tpu_custom_call.1} parent=39 // pred_check_branch
          %432 = sbr.rel (0) target = $region130
        $region129: #{tpu_custom_call.1} parent=39 // pred_region
          %433 = vsyncadd [#allocation3], 16
        $region130: #{tpu_custom_call.1} parent=39 // pred_fallthru
          _
        %s434 = sadd.s32 %s270, 3
        %s435 = sshra.s32 %s434, 7
        %s436 = sand.u32 %s434, 127
        %s437 = sadd.s32 %s435, %s32
        %s438 = smul.u32 %s437, 128
        %s439 = sshra.s32 %s434, 7
        %s440 = sand.u32 %s434, 127
        %s441 = sadd.s32 %s438, %s440
        %s442 = sld [smem:[#allocation5 + %s441]]
        %s443 = scalar_lea.vmem %s2, %s442
        %s444 = scalar_lea.vmem [#allocation2], 3
        %p446 = scmp.lt.u32.totalorder 1, 8
        %p447 = pneg %p446
        // Predicated region
        $region131: #{tpu_custom_call.1} parent=39 // pred_check
          _
        $region132: #{tpu_custom_call.1} parent=39 // pred_check_branch
          %449 = sbr.rel (%p446) target = $region134
        $region133: #{tpu_custom_call.1} parent=39 // pred_region
          %s464 = sand.u32 1, 7
          %p465 = scmp.eq.s32.totalorder %s464, 0
          %p466 = pneg %p465
          // Predicated region
          $region146: #{tpu_custom_call.1} parent=133 // pred_check
            _
          $region147: #{tpu_custom_call.1} parent=133 // pred_check_branch
            %468 = sbr.rel (%p465) target = $region149
          $region148: #{tpu_custom_call.1} parent=133 // pred_region
            %s469 = sand.u32 1, 7
            %s470 = ssub.s32 1, %s469
            %s471 = scalar_lea.vmem %s443, %s470
            %s472 = ssub.s32 1, %s469
            %s473 = scalar_lea.vmem %s444, %s472 [#allocation2]
            %s474 = sshllo.u32 0, %s469
            loop: start=0, step=1, limit=1
            $region150: #{tpu_custom_call.1} parent=148 // loop_pre_header
              _
            $region151: #{tpu_custom_call.1} parent=148 // loop_header
              %s476 = sphi 0, %s480
              %p477 = scmp.ge.s32.totalorder %s476, 1
              %s481 = sphi %s471, %s471
              %s482 = sphi %s473, %s473
            $region152: #{tpu_custom_call.1} parent=148 // loop_header_branch
              %479 = sbr.rel (%p477) target = $region156
            $region153: #{tpu_custom_call.1} parent=148 // loop_body
              %v483 = vld [vmem:[%s481] sm:%s474]
              %484 = vst [vmem:[%s482] sm:%s474] %v483
            $region154: #{tpu_custom_call.1} parent=148 // loop_footer
              %s480 = sadd.s32 1, %s476
            $region155: #{tpu_custom_call.1} parent=148 // loop_footer_branch
              %475 = sbr.rel target = $region151
            $region156: #{tpu_custom_call.1} parent=148 // loop_exit
              _
          $region149: #{tpu_custom_call.1} parent=133 // pred_fallthru
            _
        $region134: #{tpu_custom_call.1} parent=39 // pred_fallthru
          _
        // Predicated region
        $region135: #{tpu_custom_call.1} parent=39 // pred_check
          %p450 = pneg %p446
        $region136: #{tpu_custom_call.1} parent=39 // pred_check_branch
          %452 = sbr.rel (%p450) target = $region138
        $region137: #{tpu_custom_call.1} parent=39 // pred_region
          %s453 = sshllo.u32 0, 1
          loop: start=0, step=1, limit=1
          $region139: #{tpu_custom_call.1} parent=137 // loop_pre_header
            _
          $region140: #{tpu_custom_call.1} parent=137 // loop_header
            %s455 = sphi 0, %s459
            %p456 = scmp.ge.s32.totalorder %s455, 1
            %s460 = sphi %s443, %s443
            %s461 = sphi %s444, %s444
          $region141: #{tpu_custom_call.1} parent=137 // loop_header_branch
            %458 = sbr.rel (%p456) target = $region145
          $region142: #{tpu_custom_call.1} parent=137 // loop_body
            %v462 = vld [vmem:[%s460] sm:%s453]
            %463 = vst [vmem:[%s461] sm:%s453] %v462
          $region143: #{tpu_custom_call.1} parent=137 // loop_footer
            %s459 = sadd.s32 1, %s455
          $region144: #{tpu_custom_call.1} parent=137 // loop_footer_branch
            %454 = sbr.rel target = $region140
          $region145: #{tpu_custom_call.1} parent=137 // loop_exit
            _
        $region138: #{tpu_custom_call.1} parent=39 // pred_fallthru
          _
        // Predicated region
        $region157: #{tpu_custom_call.1} parent=39 // pred_check
          _
        $region158: #{tpu_custom_call.1} parent=39 // pred_check_branch
          %487 = sbr.rel (0) target = $region160
        $region159: #{tpu_custom_call.1} parent=39 // pred_region
          %488 = vsyncadd [#allocation3], 16
        $region160: #{tpu_custom_call.1} parent=39 // pred_fallthru
          _
        %s489 = sadd.s32 %s270, 4
        %s490 = sshra.s32 %s489, 7
        %s491 = sand.u32 %s489, 127
        %s492 = sadd.s32 %s490, %s32
        %s493 = smul.u32 %s492, 128
        %s494 = sshra.s32 %s489, 7
        %s495 = sand.u32 %s489, 127
        %s496 = sadd.s32 %s493, %s495
        %s497 = sld [smem:[#allocation5 + %s496]]
        %s498 = scalar_lea.vmem %s2, %s497
        %s499 = scalar_lea.vmem [#allocation2], 4
        %p501 = scmp.lt.u32.totalorder 1, 8
        %p502 = pneg %p501
        // Predicated region
        $region161: #{tpu_custom_call.1} parent=39 // pred_check
          _
        $region162: #{tpu_custom_call.1} parent=39 // pred_check_branch
          %504 = sbr.rel (%p501) target = $region164
        $region163: #{tpu_custom_call.1} parent=39 // pred_region
          %s519 = sand.u32 1, 7
          %p520 = scmp.eq.s32.totalorder %s519, 0
          %p521 = pneg %p520
          // Predicated region
          $region176: #{tpu_custom_call.1} parent=163 // pred_check
            _
          $region177: #{tpu_custom_call.1} parent=163 // pred_check_branch
            %523 = sbr.rel (%p520) target = $region179
          $region178: #{tpu_custom_call.1} parent=163 // pred_region
            %s524 = sand.u32 1, 7
            %s525 = ssub.s32 1, %s524
            %s526 = scalar_lea.vmem %s498, %s525
            %s527 = ssub.s32 1, %s524
            %s528 = scalar_lea.vmem %s499, %s527 [#allocation2]
            %s529 = sshllo.u32 0, %s524
            loop: start=0, step=1, limit=1
            $region180: #{tpu_custom_call.1} parent=178 // loop_pre_header
              _
            $region181: #{tpu_custom_call.1} parent=178 // loop_header
              %s531 = sphi 0, %s535
              %p532 = scmp.ge.s32.totalorder %s531, 1
              %s536 = sphi %s526, %s526
              %s537 = sphi %s528, %s528
            $region182: #{tpu_custom_call.1} parent=178 // loop_header_branch
              %534 = sbr.rel (%p532) target = $region186
            $region183: #{tpu_custom_call.1} parent=178 // loop_body
              %v538 = vld [vmem:[%s536] sm:%s529]
              %539 = vst [vmem:[%s537] sm:%s529] %v538
            $region184: #{tpu_custom_call.1} parent=178 // loop_footer
              %s535 = sadd.s32 1, %s531
            $region185: #{tpu_custom_call.1} parent=178 // loop_footer_branch
              %530 = sbr.rel target = $region181
            $region186: #{tpu_custom_call.1} parent=178 // loop_exit
              _
          $region179: #{tpu_custom_call.1} parent=163 // pred_fallthru
            _
        $region164: #{tpu_custom_call.1} parent=39 // pred_fallthru
          _
        // Predicated region
        $region165: #{tpu_custom_call.1} parent=39 // pred_check
          %p505 = pneg %p501
        $region166: #{tpu_custom_call.1} parent=39 // pred_check_branch
          %507 = sbr.rel (%p505) target = $region168
        $region167: #{tpu_custom_call.1} parent=39 // pred_region
          %s508 = sshllo.u32 0, 1
          loop: start=0, step=1, limit=1
          $region169: #{tpu_custom_call.1} parent=167 // loop_pre_header
            _
          $region170: #{tpu_custom_call.1} parent=167 // loop_header
            %s510 = sphi 0, %s514
            %p511 = scmp.ge.s32.totalorder %s510, 1
            %s515 = sphi %s498, %s498
            %s516 = sphi %s499, %s499
          $region171: #{tpu_custom_call.1} parent=167 // loop_header_branch
            %513 = sbr.rel (%p511) target = $region175
          $region172: #{tpu_custom_call.1} parent=167 // loop_body
            %v517 = vld [vmem:[%s515] sm:%s508]
            %518 = vst [vmem:[%s516] sm:%s508] %v517
          $region173: #{tpu_custom_call.1} parent=167 // loop_footer
            %s514 = sadd.s32 1, %s510
          $region174: #{tpu_custom_call.1} parent=167 // loop_footer_branch
            %509 = sbr.rel target = $region170
          $region175: #{tpu_custom_call.1} parent=167 // loop_exit
            _
        $region168: #{tpu_custom_call.1} parent=39 // pred_fallthru
          _
        // Predicated region
        $region187: #{tpu_custom_call.1} parent=39 // pred_check
          _
        $region188: #{tpu_custom_call.1} parent=39 // pred_check_branch
          %542 = sbr.rel (0) target = $region190
        $region189: #{tpu_custom_call.1} parent=39 // pred_region
          %543 = vsyncadd [#allocation3], 16
        $region190: #{tpu_custom_call.1} parent=39 // pred_fallthru
          _
        %s544 = sadd.s32 %s270, 5
        %s545 = sshra.s32 %s544, 7
        %s546 = sand.u32 %s544, 127
        %s547 = sadd.s32 %s545, %s32
        %s548 = smul.u32 %s547, 128
        %s549 = sshra.s32 %s544, 7
        %s550 = sand.u32 %s544, 127
        %s551 = sadd.s32 %s548, %s550
        %s552 = sld [smem:[#allocation5 + %s551]]
        %s553 = scalar_lea.vmem %s2, %s552
        %s554 = scalar_lea.vmem [#allocation2], 5
        %p556 = scmp.lt.u32.totalorder 1, 8
        %p557 = pneg %p556
        // Predicated region
        $region191: #{tpu_custom_call.1} parent=39 // pred_check
          _
        $region192: #{tpu_custom_call.1} parent=39 // pred_check_branch
          %559 = sbr.rel (%p556) target = $region194
        $region193: #{tpu_custom_call.1} parent=39 // pred_region
          %s574 = sand.u32 1, 7
          %p575 = scmp.eq.s32.totalorder %s574, 0
          %p576 = pneg %p575
          // Predicated region
          $region206: #{tpu_custom_call.1} parent=193 // pred_check
            _
          $region207: #{tpu_custom_call.1} parent=193 // pred_check_branch
            %578 = sbr.rel (%p575) target = $region209
          $region208: #{tpu_custom_call.1} parent=193 // pred_region
            %s579 = sand.u32 1, 7
            %s580 = ssub.s32 1, %s579
            %s581 = scalar_lea.vmem %s553, %s580
            %s582 = ssub.s32 1, %s579
            %s583 = scalar_lea.vmem %s554, %s582 [#allocation2]
            %s584 = sshllo.u32 0, %s579
            loop: start=0, step=1, limit=1
            $region210: #{tpu_custom_call.1} parent=208 // loop_pre_header
              _
            $region211: #{tpu_custom_call.1} parent=208 // loop_header
              %s586 = sphi 0, %s590
              %p587 = scmp.ge.s32.totalorder %s586, 1
              %s591 = sphi %s581, %s581
              %s592 = sphi %s583, %s583
            $region212: #{tpu_custom_call.1} parent=208 // loop_header_branch
              %589 = sbr.rel (%p587) target = $region216
            $region213: #{tpu_custom_call.1} parent=208 // loop_body
              %v593 = vld [vmem:[%s591] sm:%s584]
              %594 = vst [vmem:[%s592] sm:%s584] %v593
            $region214: #{tpu_custom_call.1} parent=208 // loop_footer
              %s590 = sadd.s32 1, %s586
            $region215: #{tpu_custom_call.1} parent=208 // loop_footer_branch
              %585 = sbr.rel target = $region211
            $region216: #{tpu_custom_call.1} parent=208 // loop_exit
              _
          $region209: #{tpu_custom_call.1} parent=193 // pred_fallthru
            _
        $region194: #{tpu_custom_call.1} parent=39 // pred_fallthru
          _
        // Predicated region
        $region195: #{tpu_custom_call.1} parent=39 // pred_check
          %p560 = pneg %p556
        $region196: #{tpu_custom_call.1} parent=39 // pred_check_branch
          %562 = sbr.rel (%p560) target = $region198
        $region197: #{tpu_custom_call.1} parent=39 // pred_region
          %s563 = sshllo.u32 0, 1
          loop: start=0, step=1, limit=1
          $region199: #{tpu_custom_call.1} parent=197 // loop_pre_header
            _
          $region200: #{tpu_custom_call.1} parent=197 // loop_header
            %s565 = sphi 0, %s569
            %p566 = scmp.ge.s32.totalorder %s565, 1
            %s570 = sphi %s553, %s553
            %s571 = sphi %s554, %s554
          $region201: #{tpu_custom_call.1} parent=197 // loop_header_branch
            %568 = sbr.rel (%p566) target = $region205
          $region202: #{tpu_custom_call.1} parent=197 // loop_body
            %v572 = vld [vmem:[%s570] sm:%s563]
            %573 = vst [vmem:[%s571] sm:%s563] %v572
          $region203: #{tpu_custom_call.1} parent=197 // loop_footer
            %s569 = sadd.s32 1, %s565
          $region204: #{tpu_custom_call.1} parent=197 // loop_footer_branch
            %564 = sbr.rel target = $region200
          $region205: #{tpu_custom_call.1} parent=197 // loop_exit
            _
        $region198: #{tpu_custom_call.1} parent=39 // pred_fallthru
          _
        // Predicated region
        $region217: #{tpu_custom_call.1} parent=39 // pred_check
          _
        $region218: #{tpu_custom_call.1} parent=39 // pred_check_branch
          %597 = sbr.rel (0) target = $region220
        $region219: #{tpu_custom_call.1} parent=39 // pred_region
          %598 = vsyncadd [#allocation3], 16
        $region220: #{tpu_custom_call.1} parent=39 // pred_fallthru
          _
        %s599 = sadd.s32 %s270, 6
        %s600 = sshra.s32 %s599, 7
        %s601 = sand.u32 %s599, 127
        %s602 = sadd.s32 %s600, %s32
        %s603 = smul.u32 %s602, 128
        %s604 = sshra.s32 %s599, 7
        %s605 = sand.u32 %s599, 127
        %s606 = sadd.s32 %s603, %s605
        %s607 = sld [smem:[#allocation5 + %s606]]
        %s608 = scalar_lea.vmem %s2, %s607
        %s609 = scalar_lea.vmem [#allocation2], 6
        %p611 = scmp.lt.u32.totalorder 1, 8
        %p612 = pneg %p611
        // Predicated region
        $region221: #{tpu_custom_call.1} parent=39 // pred_check
          _
        $region222: #{tpu_custom_call.1} parent=39 // pred_check_branch
          %614 = sbr.rel (%p611) target = $region224
        $region223: #{tpu_custom_call.1} parent=39 // pred_region
          %s629 = sand.u32 1, 7
          %p630 = scmp.eq.s32.totalorder %s629, 0
          %p631 = pneg %p630
          // Predicated region
          $region236: #{tpu_custom_call.1} parent=223 // pred_check
            _
          $region237: #{tpu_custom_call.1} parent=223 // pred_check_branch
            %633 = sbr.rel (%p630) target = $region239
          $region238: #{tpu_custom_call.1} parent=223 // pred_region
            %s634 = sand.u32 1, 7
            %s635 = ssub.s32 1, %s634
            %s636 = scalar_lea.vmem %s608, %s635
            %s637 = ssub.s32 1, %s634
            %s638 = scalar_lea.vmem %s609, %s637 [#allocation2]
            %s639 = sshllo.u32 0, %s634
            loop: start=0, step=1, limit=1
            $region240: #{tpu_custom_call.1} parent=238 // loop_pre_header
              _
            $region241: #{tpu_custom_call.1} parent=238 // loop_header
              %s641 = sphi 0, %s645
              %p642 = scmp.ge.s32.totalorder %s641, 1
              %s646 = sphi %s636, %s636
              %s647 = sphi %s638, %s638
            $region242: #{tpu_custom_call.1} parent=238 // loop_header_branch
              %644 = sbr.rel (%p642) target = $region246
            $region243: #{tpu_custom_call.1} parent=238 // loop_body
              %v648 = vld [vmem:[%s646] sm:%s639]
              %649 = vst [vmem:[%s647] sm:%s639] %v648
            $region244: #{tpu_custom_call.1} parent=238 // loop_footer
              %s645 = sadd.s32 1, %s641
            $region245: #{tpu_custom_call.1} parent=238 // loop_footer_branch
              %640 = sbr.rel target = $region241
            $region246: #{tpu_custom_call.1} parent=238 // loop_exit
              _
          $region239: #{tpu_custom_call.1} parent=223 // pred_fallthru
            _
        $region224: #{tpu_custom_call.1} parent=39 // pred_fallthru
          _
        // Predicated region
        $region225: #{tpu_custom_call.1} parent=39 // pred_check
          %p615 = pneg %p611
        $region226: #{tpu_custom_call.1} parent=39 // pred_check_branch
          %617 = sbr.rel (%p615) target = $region228
        $region227: #{tpu_custom_call.1} parent=39 // pred_region
          %s618 = sshllo.u32 0, 1
          loop: start=0, step=1, limit=1
          $region229: #{tpu_custom_call.1} parent=227 // loop_pre_header
            _
          $region230: #{tpu_custom_call.1} parent=227 // loop_header
            %s620 = sphi 0, %s624
            %p621 = scmp.ge.s32.totalorder %s620, 1
            %s625 = sphi %s608, %s608
            %s626 = sphi %s609, %s609
          $region231: #{tpu_custom_call.1} parent=227 // loop_header_branch
            %623 = sbr.rel (%p621) target = $region235
          $region232: #{tpu_custom_call.1} parent=227 // loop_body
            %v627 = vld [vmem:[%s625] sm:%s618]
            %628 = vst [vmem:[%s626] sm:%s618] %v627
          $region233: #{tpu_custom_call.1} parent=227 // loop_footer
            %s624 = sadd.s32 1, %s620
          $region234: #{tpu_custom_call.1} parent=227 // loop_footer_branch
            %619 = sbr.rel target = $region230
          $region235: #{tpu_custom_call.1} parent=227 // loop_exit
            _
        $region228: #{tpu_custom_call.1} parent=39 // pred_fallthru
          _
        // Predicated region
        $region247: #{tpu_custom_call.1} parent=39 // pred_check
          _
        $region248: #{tpu_custom_call.1} parent=39 // pred_check_branch
          %652 = sbr.rel (0) target = $region250
        $region249: #{tpu_custom_call.1} parent=39 // pred_region
          %653 = vsyncadd [#allocation3], 16
        $region250: #{tpu_custom_call.1} parent=39 // pred_fallthru
          _
        %s654 = sadd.s32 %s270, 7
        %s655 = sshra.s32 %s654, 7
        %s656 = sand.u32 %s654, 127
        %s657 = sadd.s32 %s655, %s32
        %s658 = smul.u32 %s657, 128
        %s659 = sshra.s32 %s654, 7
        %s660 = sand.u32 %s654, 127
        %s661 = sadd.s32 %s658, %s660
        %s662 = sld [smem:[#allocation5 + %s661]]
        %s663 = scalar_lea.vmem %s2, %s662
        %s664 = scalar_lea.vmem [#allocation2], 7
        %p666 = scmp.lt.u32.totalorder 1, 8
        %p667 = pneg %p666
        // Predicated region
        $region251: #{tpu_custom_call.1} parent=39 // pred_check
          _
        $region252: #{tpu_custom_call.1} parent=39 // pred_check_branch
          %669 = sbr.rel (%p666) target = $region254
        $region253: #{tpu_custom_call.1} parent=39 // pred_region
          %s684 = sand.u32 1, 7
          %p685 = scmp.eq.s32.totalorder %s684, 0
          %p686 = pneg %p685
          // Predicated region
          $region266: #{tpu_custom_call.1} parent=253 // pred_check
            _
          $region267: #{tpu_custom_call.1} parent=253 // pred_check_branch
            %688 = sbr.rel (%p685) target = $region269
          $region268: #{tpu_custom_call.1} parent=253 // pred_region
            %s689 = sand.u32 1, 7
            %s690 = ssub.s32 1, %s689
            %s691 = scalar_lea.vmem %s663, %s690
            %s692 = ssub.s32 1, %s689
            %s693 = scalar_lea.vmem %s664, %s692 [#allocation2]
            %s694 = sshllo.u32 0, %s689
            loop: start=0, step=1, limit=1
            $region270: #{tpu_custom_call.1} parent=268 // loop_pre_header
              _
            $region271: #{tpu_custom_call.1} parent=268 // loop_header
              %s696 = sphi 0, %s700
              %p697 = scmp.ge.s32.totalorder %s696, 1
              %s701 = sphi %s691, %s691
              %s702 = sphi %s693, %s693
            $region272: #{tpu_custom_call.1} parent=268 // loop_header_branch
              %699 = sbr.rel (%p697) target = $region276
            $region273: #{tpu_custom_call.1} parent=268 // loop_body
              %v703 = vld [vmem:[%s701] sm:%s694]
              %704 = vst [vmem:[%s702] sm:%s694] %v703
            $region274: #{tpu_custom_call.1} parent=268 // loop_footer
              %s700 = sadd.s32 1, %s696
            $region275: #{tpu_custom_call.1} parent=268 // loop_footer_branch
              %695 = sbr.rel target = $region271
            $region276: #{tpu_custom_call.1} parent=268 // loop_exit
              _
          $region269: #{tpu_custom_call.1} parent=253 // pred_fallthru
            _
        $region254: #{tpu_custom_call.1} parent=39 // pred_fallthru
          _
        // Predicated region
        $region255: #{tpu_custom_call.1} parent=39 // pred_check
          %p670 = pneg %p666
        $region256: #{tpu_custom_call.1} parent=39 // pred_check_branch
          %672 = sbr.rel (%p670) target = $region258
        $region257: #{tpu_custom_call.1} parent=39 // pred_region
          %s673 = sshllo.u32 0, 1
          loop: start=0, step=1, limit=1
          $region259: #{tpu_custom_call.1} parent=257 // loop_pre_header
            _
          $region260: #{tpu_custom_call.1} parent=257 // loop_header
            %s675 = sphi 0, %s679
            %p676 = scmp.ge.s32.totalorder %s675, 1
            %s680 = sphi %s663, %s663
            %s681 = sphi %s664, %s664
          $region261: #{tpu_custom_call.1} parent=257 // loop_header_branch
            %678 = sbr.rel (%p676) target = $region265
          $region262: #{tpu_custom_call.1} parent=257 // loop_body
            %v682 = vld [vmem:[%s680] sm:%s673]
            %683 = vst [vmem:[%s681] sm:%s673] %v682
          $region263: #{tpu_custom_call.1} parent=257 // loop_footer
            %s679 = sadd.s32 1, %s675
          $region264: #{tpu_custom_call.1} parent=257 // loop_footer_branch
            %674 = sbr.rel target = $region260
          $region265: #{tpu_custom_call.1} parent=257 // loop_exit
            _
        $region258: #{tpu_custom_call.1} parent=39 // pred_fallthru
          _
        // Predicated region
        $region277: #{tpu_custom_call.1} parent=39 // pred_check
          _
        $region278: #{tpu_custom_call.1} parent=39 // pred_check_branch
          %707 = sbr.rel (0) target = $region280
        $region279: #{tpu_custom_call.1} parent=39 // pred_region
          %708 = vsyncadd [#allocation3], 16
        $region280: #{tpu_custom_call.1} parent=39 // pred_fallthru
          _
        %v709 = vld [vmem:[%s269] sm:$0xff]
        %v710 = vld [vmem:[%s265] sm:$0xff]
        %v711 = vld [vmem:[%s4] sm:$0x3]
        %v712 = vlaneseq
        %v713 = vshrl.u32 %v712, 7
        %v714 = vsub.s32 0, %v713
        %v715 = vrot.slane %v711, %v714
        %vm716 = vcmp.eq.s32.totalorder %v710, 1
        %v717 = vsel %vm716, 1, 0
        %718 = vset.pattern.permute.xlu0 0
        %719 = vperm.xlu0 %718, %v717
        %v720 = vpop.permute.xlu0 %719
        %vm721 = vcmp.eq.s32.totalorder %v720, 1
        %v722 = vlaneseq
        %v723 = vshrl.u32 %v722, 7
        %v724 = vsub.s32 1, %v723
        %v725 = vrot.slane %v711, %v724
        %v726 = vsel %vm721, %v725, %v715
        %v727 = vadd.f32 %v709, %v726
        %s728 = sld [smem:[#allocation5 + %s277]]
        %s729 = smul.u32 1, 1
        %s730 = sshll.u32 %s729, 4
        %731 = dma.done [#allocation3], %s730
        %s732 = sld [smem:[#allocation5 + %s331]]
        %s733 = sshll.u32 %s729, 4
        %734 = dma.done [#allocation3], %s733
        %s735 = sld [smem:[#allocation5 + %s386]]
        %s736 = sshll.u32 %s729, 4
        %737 = dma.done [#allocation3], %s736
        %s738 = sld [smem:[#allocation5 + %s441]]
        %s739 = sshll.u32 %s729, 4
        %740 = dma.done [#allocation3], %s739
        %s741 = sld [smem:[#allocation5 + %s496]]
        %s742 = sshll.u32 %s729, 4
        %743 = dma.done [#allocation3], %s742
        %s744 = sld [smem:[#allocation5 + %s551]]
        %s745 = sshll.u32 %s729, 4
        %746 = dma.done [#allocation3], %s745
        %s747 = sld [smem:[#allocation5 + %s606]]
        %s748 = sshll.u32 %s729, 4
        %749 = dma.done [#allocation3], %s748
        %s750 = sld [smem:[#allocation5 + %s661]]
        %s751 = sshll.u32 %s729, 4
        %752 = dma.done [#allocation3], %s751
        %v753 = vld [vmem:[#allocation2] sm:$0xff]
        %v754 = vadd.f32 %v727, %v753
        %vm755 = vcmask 261120
        %v756 = vsel %vm755, %v754, 0.0
        %757 = vadd.xlane.f32.xlu0 %v756
        %v758 = vpop.xlane.xlu0 %757
        %v759 = vrcp.pop 32.0
        %v760 = vmul.f32 %v758, %v759
        %v761 = vsub.f32 %v754, %v760
        %v762 = vmul.f32 %v761, %v761
        %v763 = vsel %vm755, %v762, 0.0
        %764 = vadd.xlane.f32.xlu0 %v763
        %v765 = vpop.xlane.xlu0 %764
        %v766 = vmul.f32 %v765, %v759
        %v767 = vadd.f32 %v766, 1e-05
        %v768 = vrsqrt.pop %v767
        %v769 = vmul.f32 %v761, %v768
        %v770 = vld [vmem:[%s5] sm:$0x1]
        %v772 = vlaneseq
        %v773 = vshrl.u32 %v772, 7
        %v774 = vsub.s32 0, %v773
        %v775 = vrot.slane %v770, %v774
        %v777 = vmul.f32 %v769, %v775
        %v778 = vld [vmem:[%s6] sm:$0x1]
        %v780 = vlaneseq
        %v781 = vshrl.u32 %v780, 7
        %v782 = vsub.s32 0, %v781
        %v783 = vrot.slane %v778, %v782
        %v785 = vadd.f32 %v777, %v783
        %786 = vst.msk [vmem:[%s258] sm:$0xff] %vm755, %v785
        %s787 = sand.u32 %s166, 1
        %s788 = scalar_lea.sflag [#allocation7], %s787
        %s789 = sand.u32 %s166, 1
        %s790 = smul.addr %s789, 8
        %s791 = scalar_lea.vmem [#allocation6], %s790
        // Predicated region
        $region281: #{tpu_custom_call.1} parent=39 // pred_check
          %p792 = pneg %p176
        $region282: #{tpu_custom_call.1} parent=39 // pred_check_branch
          %794 = sbr.rel (%p792) target = $region284
        $region283: #{tpu_custom_call.1} parent=39 // pred_region
          %s796 = ssub.s32 128, 128
          %797 = vsyncadd %s788, %s796
          %s798 = sadd.s32 %s31, %s32
          %s799 = smul.addr %s798, 128
          %s800 = scalar_lea.hbm %s7, %s799
          %s802 = sshll.u32 %s791, 4
          %s803 = int_to_ptr.vmem [resolvable:$true] %s802
          %805 = dma.vmem_to_hbm [thread:$0]  %s803, 128, %s800, %s788
        $region284: #{tpu_custom_call.1} parent=39 // pred_fallthru
          _
      $region40: #{tpu_custom_call.1} parent=5 // pred_fallthru
        _
      %p806 = scmp.le.s32.totalorder 2, %s22
      // Predicated region
      $region285: #{tpu_custom_call.1} parent=5 // pred_check
        %p807 = pneg %p806
      $region286: #{tpu_custom_call.1} parent=5 // pred_check_branch
        %809 = sbr.rel (%p807) target = $region288
      $region287: #{tpu_custom_call.1} parent=5 // pred_region
        %s810 = ssub.s32 %s22, 2
        // Predicated region
        $region289: #{tpu_custom_call.1} parent=287 // pred_check
          %p811 = pneg %p182
        $region290: #{tpu_custom_call.1} parent=287 // pred_check_branch
          %813 = sbr.rel (%p811) target = $region292
        $region291: #{tpu_custom_call.1} parent=287 // pred_region
          %s814 = sand.u32 %s167, 1
          %s815 = scalar_lea.sflag [#allocation7], %s814
          %s816 = sand.u32 %s167, 1
          %s817 = smul.addr %s816, 8
          %s818 = scalar_lea.vmem [#allocation6], %s817
          %819 = dma.done %s815, 128
        $region292: #{tpu_custom_call.1} parent=287 // pred_fallthru
          _
      $region288: #{tpu_custom_call.1} parent=5 // pred_fallthru
        _
    $region6: #{tpu_custom_call.1} parent=1 // loop_footer
      %s26 = sadd.s32 1, %s22
    $region7: #{tpu_custom_call.1} parent=1 // loop_footer_branch
      %21 = sbr.rel target = $region3
    $region8: #{tpu_custom_call.1} parent=1 // loop_exit
      _
    %820 = vsyncpa [#allocation7], 1
    %s821 = scalar_lea.sflag [#allocation7], 1
    %822 = vsyncpa %s821, 1
  %823 = vsyncmov [#allocation3]
  %s824 = vpop.sfrf %823
  %p825 = scmp.eq.s32.totalorder %s824, 0
  %p826 = pneg %p825
  %828 = shalt.err (%p826)

</llo_original>
